<compile_context>
chip_gen: v5e
topology: v5e:2x2
jax: 0.10.0
libtpu: 0.0.40
codegen_flags: <defaults>
</compile_context>

<pallas_src>
import functools
import math

import numpy as np
import jax
import jax.numpy as jnp
from jax.experimental import pallas as pl
from jax.experimental.pallas import tpu as pltpu


# ----------------------------- Pallas kernel --------------------------------
def _make_kernel(coarse_per_tile, halo_width, lane_align):
    S = coarse_per_tile          # coarse (pre-upsample) columns covered per tile
    H = halo_width               # coarse columns actually read (S + 128, aligned)

    def kernel(tp_ref, cat_ref, e_ref,
               w1_ref, wsu_ref, wsc_ref, wi_ref, w11_ref, wr_ref,
               b1_ref, bsc_ref, bi_ref, b11_ref, br_ref,
               out_ref):
        f32, bf16 = jnp.float32, jnp.bfloat16
        j = pl.program_id(1)

        def dot(a, b):
            return jnp.dot(a, b, preferred_element_type=f32)

        # ---- up path at coarse resolution (1/upsize of the work) ------------
        start = pl.multiple_of(j * S, lane_align)
        tc = tp_ref[:, pl.ds(start, H)]                               # (Cin, H) bf16
        up_s = jnp.maximum(dot(w1_ref[...], tc) + b1_ref[...], 0.0)   # (Cout, H) f32
        # nearest-upsample + padding=1 shift folded into one exact 0/1 matmul
        up = dot(up_s.astype(bf16), e_ref[...])                       # (Cout, T) f32

        # ---- skip connect: concat-conv split into two dots -------------------
        cat = cat_ref[...].astype(bf16)                               # (Cout, T)
        cc = (dot(wsu_ref[...], up.astype(bf16))
              + dot(wsc_ref[...], cat) + bsc_ref[...])                # (Cout, T) f32

        # ---- RRconv_block -----------------------------------------------------
        c = jnp.maximum(dot(wi_ref[...], cc.astype(bf16)) + bi_ref[...], 0.0)
        c1x1 = dot(w11_ref[...], c.astype(bf16)) + b11_ref[...]       # from ORIGINAL c
        c2 = 2.0 * c                                                  # in-place alias
        r = jnp.maximum(dot(wr_ref[...], c2.astype(bf16)) + br_ref[...], 0.0)
        r = jnp.maximum(dot(wr_ref[...], (r + c2).astype(bf16)) + br_ref[...], 0.0)
        r = jnp.maximum(dot(wr_ref[...], (r + c2).astype(bf16)) + br_ref[...], 0.0)
        out_ref[...] = (r + c1x1).astype(out_ref.dtype)

    return kernel


# ------------------------------ wrapper --------------------------------------
def upconv_concat_rrblock(target, concat, kparams, upsize=5,
                          lane_tile=640, act_dtype=jnp.bfloat16):
    B, Cin, L = target.shape
    Bc, Cout, Lc = concat.shape
    assert Bc == B and Lc <= L * upsize + 2

    # lane tile must be a multiple of lcm(128, upsize) so the repeat pattern is
    # identical in every tile (grid-invariant expansion matrix).
    base = (128 * upsize) // math.gcd(128, upsize)
    T = max(base, (lane_tile // base) * base)
    S = T // upsize
    H = S + 128                              # aligned coarse read width (halo incl.)
    nj = -(-Lc // T)                         # cdiv; last lane tile may be partial
    lane_align = math.gcd(S, 128)

    # coarse, zero-prepended, zero-padded target (tiny copy; replaces the HBM
    # materialization of the upsize-x upsampled tensor).  TP[0] = 0 reproduces
    # the padding=1 leading zero column of the up-path 1x1 conv.
    Ltp = max(L + 2, nj * S + 128)
    Ltp = -(-Ltp // 128) * 128
    tp = jnp.pad(target, ((0, 0), (0, 0), (1, Ltp - 1 - L))).astype(jnp.bfloat16)

    # fixed 0/1 expansion matrix: output column t selects coarse column ceil(t/upsize)
    src = (np.arange(T) + upsize - 1) // upsize
    e = np.zeros((H, T), np.float32)
    e[src, np.arange(T)] = 1.0
    e = jnp.asarray(e, jnp.bfloat16)

    def act_spec(ch):
        return pl.BlockSpec((pl.Squeezed(), ch, T), lambda b, j: (b, 0, j))

    def const_spec(arr):
        return pl.BlockSpec(arr.shape, lambda b, j: (0, 0))

    weights = [kparams[k] for k in ("w1", "wsc_up", "wsc_cat", "wi", "w11", "wr")]
    biases = [kparams[k] for k in ("b1", "bsc", "bi", "b11", "br")]

    out = pl.pallas_call(
        _make_kernel(S, H, lane_align),
        out_shape=jax.ShapeDtypeStruct((B, Cout, Lc), act_dtype),
        grid_spec=pltpu.PrefetchScalarGridSpec(
            num_scalar_prefetch=0,
            grid=(B, nj),
            in_specs=[
                pl.BlockSpec((pl.Squeezed(), Cin, Ltp), lambda b, j: (b, 0, 0)),
                act_spec(Cout),                 # concat, read raw (cast in-kernel)
                const_spec(e),
            ] + [const_spec(w) for w in weights] + [const_spec(b) for b in biases],
            out_specs=act_spec(Cout),
        ),
        compiler_params=pltpu.CompilerParams(
            dimension_semantics=("parallel", "parallel")),
    )(tp, concat, e, *weights, *biases)
    return out                               # (B, Cout, Lc), act_dtype


# --------------------------- parameter setup ----------------------------------
def _bn_affine(key, c, eps=1e-5):
    k1, k2, k3, k4 = jax.random.split(key, 4)
    gamma = 1.0 + 0.1 * jax.random.normal(k1, (c,), jnp.float32)
    beta = 0.1 * jax.random.normal(k2, (c,), jnp.float32)
    mean = 0.1 * jax.random.normal(k3, (c,), jnp.float32)
    var = 1.0 + 0.5 * jax.random.uniform(k4, (c,), jnp.float32)
    scale = gamma / jnp.sqrt(var + eps)
    shift = beta - mean * scale
    return scale, shift


def make_params(key, cin, cout):
    ks = jax.random.split(key, 12)
    w1 = 0.3 * jax.random.normal(ks[0], (cout, cin), jnp.float32)
    b1 = 0.1 * jax.random.normal(ks[1], (cout,), jnp.float32)
    s1, t1 = _bn_affine(ks[2], cout)
    wsc = 0.3 * jax.random.normal(ks[3], (cout, 2 * cout), jnp.float32)
    bsc = 0.1 * jax.random.normal(ks[4], (cout,), jnp.float32)
    wi = 0.3 * jax.random.normal(ks[5], (cout, cout), jnp.float32)
    bi = 0.1 * jax.random.normal(ks[6], (cout,), jnp.float32)
    si, ti = _bn_affine(ks[7], cout)
    w11 = 0.3 * jax.random.normal(ks[8], (cout, cout), jnp.float32)
    b11 = 0.1 * jax.random.normal(ks[9], (cout,), jnp.float32)
    wr = 0.3 * jax.random.normal(ks[10], (cout, cout), jnp.float32)
    br = 0.1 * jax.random.normal(ks[11], (cout,), jnp.float32)
    sr, tr = _bn_affine(jax.random.fold_in(key, 99), cout)
    return dict(w1=w1, b1=b1, s1=s1, t1=t1, wsc=wsc, bsc=bsc,
                wi=wi, bi=bi, si=si, ti=ti, w11=w11, b11=b11,
                wr=wr, br=br, sr=sr, tr=tr)


def fold_params(p):
    """Fold eval-mode BatchNorm into the convs; bf16 weights, f32 (C,1) biases."""
    def fold(w, b, s, t):
        return s[:, None] * w, s * b + t

    w1f, b1f = fold(p["w1"], p["b1"], p["s1"], p["t1"])
    wif, bif = fold(p["wi"], p["bi"], p["si"], p["ti"])
    wrf, brf = fold(p["wr"], p["br"], p["sr"], p["tr"])
    cout = w1f.shape[0]
    wsc_up, wsc_cat = p["wsc"][:, :cout], p["wsc"][:, cout:]
    w = lambda x: jnp.asarray(x, jnp.bfloat16)
    b = lambda x: jnp.asarray(x, jnp.float32).reshape(-1, 1)
    return dict(w1=w(w1f), wsc_up=w(wsc_up), wsc_cat=w(wsc_cat),
                wi=w(wif), w11=w(p["w11"]), wr=w(wrf),
                b1=b(b1f), bsc=b(p["bsc"]), bi=b(bif),
                b11=b(p["b11"]), br=b(brf))


# --------------------------- pure-JAX reference --------------------------------
def ref_forward(target, concat, raw_params, upsize, act_dtype=jnp.bfloat16):
    """Reference mirroring the kernel numerics (folded BN, bf16 matmul inputs,
    f32 accumulation, bf16 output)."""
    p = fold_params(raw_params)
    f32, bf16 = jnp.float32, jnp.bfloat16
    bf = lambda x: x.astype(bf16).astype(f32)
    W = {k: p[k].astype(f32) for k in ("w1", "wsc_up", "wsc_cat", "wi", "w11", "wr")}
    col = lambda k: p[k].astype(f32).reshape(1, -1, 1)
    ein = lambda w, x: jnp.einsum("oc,bcl->bol", w, x, precision="highest")

    Lc = concat.shape[2]
    up_in = jnp.repeat(bf(target), upsize, axis=2)               # nearest upsample
    up_in = jnp.pad(up_in, ((0, 0), (0, 0), (1, 1)))[:, :, :Lc]  # padding=1, slice
    cat = bf(concat)

    up = bf(jnp.maximum(ein(W["w1"], up_in) + col("b1"), 0.0))
    cc = ein(W["wsc_up"], up) + ein(W["wsc_cat"], cat) + col("bsc")
    c = jnp.maximum(ein(W["wi"], bf(cc)) + col("bi"), 0.0)
    c1x1 = ein(W["w11"], bf(c)) + col("b11")
    c2 = 2.0 * c
    r = jnp.maximum(ein(W["wr"], bf(c2)) + col("br"), 0.0)
    r = jnp.maximum(ein(W["wr"], bf(r + c2)) + col("br"), 0.0)
    r = jnp.maximum(ein(W["wr"], bf(r + c2)) + col("br"), 0.0)
    return (r + c1x1).astype(act_dtype)


# ------------------------------------ main -------------------------------------
if __name__ == "__main__":
    B, Cin, L = 2, 6, 256         # target_layer: (batch, in_channels, length)
    Cout = 6                      # out_channels
    upsize = 5
    Lc = 1250                     # concat_layer length (<= L*upsize + 2)

    key = jax.random.PRNGKey(0)
    k_t, k_c, k_p = jax.random.split(key, 3)
    target_layer = jax.random.normal(k_t, (B, Cin, L), jnp.float32)
    concat_layer = jax.random.normal(k_c, (B, Cout, Lc), jnp.float32)

    raw_params = make_params(k_p, Cin, Cout)
    kernel_params = fold_params(raw_params)

    fwd = jax.jit(functools.partial(upconv_concat_rrblock,
                                    upsize=upsize, lane_tile=640))
    out = jax.block_until_ready(fwd(target_layer, concat_layer, kernel_params))

    ref = jax.block_until_ready(
        ref_forward(target_layer, concat_layer, raw_params, upsize))

    if out.shape != (B, Cout, Lc):
        raise AssertionError(f"bad output shape {out.shape}")
    out_f32 = np.asarray(out, dtype=np.float32)
    ref_f32 = np.asarray(ref, dtype=np.float32)
    max_err = float(np.max(np.abs(out_f32 - ref_f32)))
    if not np.allclose(out_f32, ref_f32, rtol=2e-2, atol=2e-2):
        raise AssertionError(
            f"Pallas kernel does not match reference (max abs err {max_err})")

    print("KERNEL_OK")
</pallas_src>

<mosaic_0001>
module attributes {stable_mosaic.version = 11 : i64} {
  func.func @kernel(%arg0: i32, %arg1: i32, %arg2: memref<1x6x384xbf16, #tpu.memory_space<vmem>>, %arg3: memref<1x6x640xf32, #tpu.memory_space<vmem>>, %arg4: memref<256x640xbf16, #tpu.memory_space<vmem>>, %arg5: memref<6x6xbf16, #tpu.memory_space<vmem>>, %arg6: memref<6x6xbf16, #tpu.memory_space<vmem>>, %arg7: memref<6x6xbf16, #tpu.memory_space<vmem>>, %arg8: memref<6x6xbf16, #tpu.memory_space<vmem>>, %arg9: memref<6x6xbf16, #tpu.memory_space<vmem>>, %arg10: memref<6x6xbf16, #tpu.memory_space<vmem>>, %arg11: memref<6x1xf32, #tpu.memory_space<vmem>>, %arg12: memref<6x1xf32, #tpu.memory_space<vmem>>, %arg13: memref<6x1xf32, #tpu.memory_space<vmem>>, %arg14: memref<6x1xf32, #tpu.memory_space<vmem>>, %arg15: memref<6x1xf32, #tpu.memory_space<vmem>>, %arg16: memref<1x6x640xbf16, #tpu.memory_space<vmem>>) attributes {dimension_semantics = [#tpu.dimension_semantics<parallel>, #tpu.dimension_semantics<parallel>], iteration_bounds = array<i64: 2, 2>, scalar_prefetch = 0 : i64, scratch_operands = 0 : i64, tpu.core_type = #tpu.core_type<tc>, window_params = [{transform_indices = @transform_0, window_bounds = array<i64: 1, 6, 384>}, {transform_indices = @transform_1, window_bounds = array<i64: 1, 6, 640>}, {pipeline_mode = #tpu.pipeline_mode<synchronous>, transform_indices = @transform_2, window_bounds = array<i64: 256, 640>}, {pipeline_mode = #tpu.pipeline_mode<synchronous>, transform_indices = @transform_3, window_bounds = array<i64: 6, 6>}, {pipeline_mode = #tpu.pipeline_mode<synchronous>, transform_indices = @transform_4, window_bounds = array<i64: 6, 6>}, {pipeline_mode = #tpu.pipeline_mode<synchronous>, transform_indices = @transform_5, window_bounds = array<i64: 6, 6>}, {pipeline_mode = #tpu.pipeline_mode<synchronous>, transform_indices = @transform_6, window_bounds = array<i64: 6, 6>}, {pipeline_mode = #tpu.pipeline_mode<synchronous>, transform_indices = @transform_7, window_bounds = array<i64: 6, 6>}, {pipeline_mode = #tpu.pipeline_mode<synchronous>, transform_indices = @transform_8, window_bounds = array<i64: 6, 6>}, {pipeline_mode = #tpu.pipeline_mode<synchronous>, transform_indices = @transform_9, window_bounds = array<i64: 6, 1>}, {pipeline_mode = #tpu.pipeline_mode<synchronous>, transform_indices = @transform_10, window_bounds = array<i64: 6, 1>}, {pipeline_mode = #tpu.pipeline_mode<synchronous>, transform_indices = @transform_11, window_bounds = array<i64: 6, 1>}, {pipeline_mode = #tpu.pipeline_mode<synchronous>, transform_indices = @transform_12, window_bounds = array<i64: 6, 1>}, {pipeline_mode = #tpu.pipeline_mode<synchronous>, transform_indices = @transform_13, window_bounds = array<i64: 6, 1>}, {transform_indices = @transform_14, window_bounds = array<i64: 1, 6, 640>}]} {
    %c128_i32 = arith.constant 128 : i32
    %0 = arith.muli %arg1, %c128_i32 : i32
    %1 = tpu.assume_multiple %0, 128 : i32
    %c0 = arith.constant 0 : index
    %c0_0 = arith.constant 0 : index
    %2 = arith.index_cast %1 : i32 to index
    %3 = vector.load %arg2[%c0, %c0_0, %2] : memref<1x6x384xbf16, #tpu.memory_space<vmem>>, vector<1x6x256xbf16>
    %4 = vector.shape_cast %3 : vector<1x6x256xbf16> to vector<6x256xbf16>
    %c0_1 = arith.constant 0 : index
    %c0_2 = arith.constant 0 : index
    %5 = vector.load %arg5[%c0_1, %c0_2] : memref<6x6xbf16, #tpu.memory_space<vmem>>, vector<6x6xbf16>
    %cst = arith.constant dense<0.000000e+00> : vector<6x256xf32>
    %6 = tpu.matmul %5, %4, %cst {dimension_numbers = #tpu.dot_dimension_numbers<[1], [0], [0], [1], [0, 0, 1, 1], [], []>} : vector<6x6xbf16>, vector<6x256xbf16>, vector<6x256xf32> -> vector<6x256xf32>
    %c0_3 = arith.constant 0 : index
    %c0_4 = arith.constant 0 : index
    %7 = vector.load %arg11[%c0_3, %c0_4] : memref<6x1xf32, #tpu.memory_space<vmem>>, vector<6x1xf32>
    %8 = vector.broadcast %7 : vector<6x1xf32> to vector<6x256xf32>
    %9 = arith.addf %6, %8 : vector<6x256xf32>
    %cst_5 = arith.constant 0.000000e+00 : f32
    %10 = vector.broadcast %cst_5 : f32 to vector<6x256xf32>
    %11 = arith.maximumf %9, %10 : vector<6x256xf32>
    %12 = arith.truncf %11 : vector<6x256xf32> to vector<6x256xbf16>
    %c0_6 = arith.constant 0 : index
    %c0_7 = arith.constant 0 : index
    %13 = vector.load %arg4[%c0_6, %c0_7] : memref<256x640xbf16, #tpu.memory_space<vmem>>, vector<256x640xbf16>
    %cst_8 = arith.constant dense<0.000000e+00> : vector<6x640xf32>
    %14 = tpu.matmul %12, %13, %cst_8 {dimension_numbers = #tpu.dot_dimension_numbers<[1], [0], [0], [1], [0, 0, 1, 1], [], []>} : vector<6x256xbf16>, vector<256x640xbf16>, vector<6x640xf32> -> vector<6x640xf32>
    %c0_9 = arith.constant 0 : index
    %c0_10 = arith.constant 0 : index
    %c0_11 = arith.constant 0 : index
    %15 = vector.load %arg3[%c0_9, %c0_10, %c0_11] : memref<1x6x640xf32, #tpu.memory_space<vmem>>, vector<1x6x640xf32>
    %16 = vector.shape_cast %15 : vector<1x6x640xf32> to vector<6x640xf32>
    %17 = arith.truncf %16 : vector<6x640xf32> to vector<6x640xbf16>
    %c0_12 = arith.constant 0 : index
    %c0_13 = arith.constant 0 : index
    %18 = vector.load %arg6[%c0_12, %c0_13] : memref<6x6xbf16, #tpu.memory_space<vmem>>, vector<6x6xbf16>
    %19 = arith.truncf %14 : vector<6x640xf32> to vector<6x640xbf16>
    %cst_14 = arith.constant dense<0.000000e+00> : vector<6x640xf32>
    %20 = tpu.matmul %18, %19, %cst_14 {dimension_numbers = #tpu.dot_dimension_numbers<[1], [0], [0], [1], [0, 0, 1, 1], [], []>} : vector<6x6xbf16>, vector<6x640xbf16>, vector<6x640xf32> -> vector<6x640xf32>
    %c0_15 = arith.constant 0 : index
    %c0_16 = arith.constant 0 : index
    %21 = vector.load %arg7[%c0_15, %c0_16] : memref<6x6xbf16, #tpu.memory_space<vmem>>, vector<6x6xbf16>
    %cst_17 = arith.constant dense<0.000000e+00> : vector<6x640xf32>
    %22 = tpu.matmul %21, %17, %cst_17 {dimension_numbers = #tpu.dot_dimension_numbers<[1], [0], [0], [1], [0, 0, 1, 1], [], []>} : vector<6x6xbf16>, vector<6x640xbf16>, vector<6x640xf32> -> vector<6x640xf32>
    %23 = arith.addf %20, %22 : vector<6x640xf32>
    %c0_18 = arith.constant 0 : index
    %c0_19 = arith.constant 0 : index
    %24 = vector.load %arg12[%c0_18, %c0_19] : memref<6x1xf32, #tpu.memory_space<vmem>>, vector<6x1xf32>
    %25 = vector.broadcast %24 : vector<6x1xf32> to vector<6x640xf32>
    %26 = arith.addf %23, %25 : vector<6x640xf32>
    %c0_20 = arith.constant 0 : index
    %c0_21 = arith.constant 0 : index
    %27 = vector.load %arg8[%c0_20, %c0_21] : memref<6x6xbf16, #tpu.memory_space<vmem>>, vector<6x6xbf16>
    %28 = arith.truncf %26 : vector<6x640xf32> to vector<6x640xbf16>
    %cst_22 = arith.constant dense<0.000000e+00> : vector<6x640xf32>
    %29 = tpu.matmul %27, %28, %cst_22 {dimension_numbers = #tpu.dot_dimension_numbers<[1], [0], [0], [1], [0, 0, 1, 1], [], []>} : vector<6x6xbf16>, vector<6x640xbf16>, vector<6x640xf32> -> vector<6x640xf32>
    %c0_23 = arith.constant 0 : index
    %c0_24 = arith.constant 0 : index
    %30 = vector.load %arg13[%c0_23, %c0_24] : memref<6x1xf32, #tpu.memory_space<vmem>>, vector<6x1xf32>
    %31 = vector.broadcast %30 : vector<6x1xf32> to vector<6x640xf32>
    %32 = arith.addf %29, %31 : vector<6x640xf32>
    %cst_25 = arith.constant 0.000000e+00 : f32
    %33 = vector.broadcast %cst_25 : f32 to vector<6x640xf32>
    %34 = arith.maximumf %32, %33 : vector<6x640xf32>
    %c0_26 = arith.constant 0 : index
    %c0_27 = arith.constant 0 : index
    %35 = vector.load %arg9[%c0_26, %c0_27] : memref<6x6xbf16, #tpu.memory_space<vmem>>, vector<6x6xbf16>
    %36 = arith.truncf %34 : vector<6x640xf32> to vector<6x640xbf16>
    %cst_28 = arith.constant dense<0.000000e+00> : vector<6x640xf32>
    %37 = tpu.matmul %35, %36, %cst_28 {dimension_numbers = #tpu.dot_dimension_numbers<[1], [0], [0], [1], [0, 0, 1, 1], [], []>} : vector<6x6xbf16>, vector<6x640xbf16>, vector<6x640xf32> -> vector<6x640xf32>
    %c0_29 = arith.constant 0 : index
    %c0_30 = arith.constant 0 : index
    %38 = vector.load %arg14[%c0_29, %c0_30] : memref<6x1xf32, #tpu.memory_space<vmem>>, vector<6x1xf32>
    %39 = vector.broadcast %38 : vector<6x1xf32> to vector<6x640xf32>
    %40 = arith.addf %37, %39 : vector<6x640xf32>
    %cst_31 = arith.constant 2.000000e+00 : f32
    %41 = vector.broadcast %cst_31 : f32 to vector<6x640xf32>
    %42 = arith.mulf %41, %34 : vector<6x640xf32>
    %c0_32 = arith.constant 0 : index
    %c0_33 = arith.constant 0 : index
    %43 = vector.load %arg10[%c0_32, %c0_33] : memref<6x6xbf16, #tpu.memory_space<vmem>>, vector<6x6xbf16>
    %44 = arith.truncf %42 : vector<6x640xf32> to vector<6x640xbf16>
    %cst_34 = arith.constant dense<0.000000e+00> : vector<6x640xf32>
    %45 = tpu.matmul %43, %44, %cst_34 {dimension_numbers = #tpu.dot_dimension_numbers<[1], [0], [0], [1], [0, 0, 1, 1], [], []>} : vector<6x6xbf16>, vector<6x640xbf16>, vector<6x640xf32> -> vector<6x640xf32>
    %c0_35 = arith.constant 0 : index
    %c0_36 = arith.constant 0 : index
    %46 = vector.load %arg15[%c0_35, %c0_36] : memref<6x1xf32, #tpu.memory_space<vmem>>, vector<6x1xf32>
    %47 = vector.broadcast %46 : vector<6x1xf32> to vector<6x640xf32>
    %48 = arith.addf %45, %47 : vector<6x640xf32>
    %cst_37 = arith.constant 0.000000e+00 : f32
    %49 = vector.broadcast %cst_37 : f32 to vector<6x640xf32>
    %50 = arith.maximumf %48, %49 : vector<6x640xf32>
    %c0_38 = arith.constant 0 : index
    %c0_39 = arith.constant 0 : index
    %51 = vector.load %arg10[%c0_38, %c0_39] : memref<6x6xbf16, #tpu.memory_space<vmem>>, vector<6x6xbf16>
    %52 = arith.addf %50, %42 : vector<6x640xf32>
    %53 = arith.truncf %52 : vector<6x640xf32> to vector<6x640xbf16>
    %cst_40 = arith.constant dense<0.000000e+00> : vector<6x640xf32>
    %54 = tpu.matmul %51, %53, %cst_40 {dimension_numbers = #tpu.dot_dimension_numbers<[1], [0], [0], [1], [0, 0, 1, 1], [], []>} : vector<6x6xbf16>, vector<6x640xbf16>, vector<6x640xf32> -> vector<6x640xf32>
    %c0_41 = arith.constant 0 : index
    %c0_42 = arith.constant 0 : index
    %55 = vector.load %arg15[%c0_41, %c0_42] : memref<6x1xf32, #tpu.memory_space<vmem>>, vector<6x1xf32>
    %56 = vector.broadcast %55 : vector<6x1xf32> to vector<6x640xf32>
    %57 = arith.addf %54, %56 : vector<6x640xf32>
    %cst_43 = arith.constant 0.000000e+00 : f32
    %58 = vector.broadcast %cst_43 : f32 to vector<6x640xf32>
    %59 = arith.maximumf %57, %58 : vector<6x640xf32>
    %c0_44 = arith.constant 0 : index
    %c0_45 = arith.constant 0 : index
    %60 = vector.load %arg10[%c0_44, %c0_45] : memref<6x6xbf16, #tpu.memory_space<vmem>>, vector<6x6xbf16>
    %61 = arith.addf %59, %42 : vector<6x640xf32>
    %62 = arith.truncf %61 : vector<6x640xf32> to vector<6x640xbf16>
    %cst_46 = arith.constant dense<0.000000e+00> : vector<6x640xf32>
    %63 = tpu.matmul %60, %62, %cst_46 {dimension_numbers = #tpu.dot_dimension_numbers<[1], [0], [0], [1], [0, 0, 1, 1], [], []>} : vector<6x6xbf16>, vector<6x640xbf16>, vector<6x640xf32> -> vector<6x640xf32>
    %c0_47 = arith.constant 0 : index
    %c0_48 = arith.constant 0 : index
    %64 = vector.load %arg15[%c0_47, %c0_48] : memref<6x1xf32, #tpu.memory_space<vmem>>, vector<6x1xf32>
    %65 = vector.broadcast %64 : vector<6x1xf32> to vector<6x640xf32>
    %66 = arith.addf %63, %65 : vector<6x640xf32>
    %cst_49 = arith.constant 0.000000e+00 : f32
    %67 = vector.broadcast %cst_49 : f32 to vector<6x640xf32>
    %68 = arith.maximumf %66, %67 : vector<6x640xf32>
    %69 = arith.addf %68, %40 : vector<6x640xf32>
    %70 = arith.truncf %69 : vector<6x640xf32> to vector<6x640xbf16>
    %c0_50 = arith.constant 0 : index
    %c0_51 = arith.constant 0 : index
    %c0_52 = arith.constant 0 : index
    %71 = vector.load %arg16[%c0_50, %c0_51, %c0_52] : memref<1x6x640xbf16, #tpu.memory_space<vmem>>, vector<1x6x640xbf16>
    %72 = vector.shape_cast %71 : vector<1x6x640xbf16> to vector<6x640xbf16>
    %73 = vector.shape_cast %70 : vector<6x640xbf16> to vector<1x6x640xbf16>
    tpu.vector_store %arg16[%c0_50, %c0_51, %c0_52], %73 {strides = array<i32>} : memref<1x6x640xbf16, #tpu.memory_space<vmem>>, vector<1x6x640xbf16>,
    return
  }
  func.func @transform_0(%arg0: i32, %arg1: i32) -> (i32, i32, i32) {
    %c0_i32 = arith.constant 0 : i32
    %c0_i32_0 = arith.constant 0 : i32
    %c0_i32_1 = arith.constant 0 : i32
    return %arg0, %c0_i32, %c0_i32_0 : i32, i32, i32
  }
  func.func @transform_1(%arg0: i32, %arg1: i32) -> (i32, i32, i32) {
    %c0_i32 = arith.constant 0 : i32
    %c0_i32_0 = arith.constant 0 : i32
    return %arg0, %c0_i32, %arg1 : i32, i32, i32
  }
  func.func @transform_2(%arg0: i32, %arg1: i32) -> (i32, i32) {
    %c0_i32 = arith.constant 0 : i32
    %c0_i32_0 = arith.constant 0 : i32
    %c0_i32_1 = arith.constant 0 : i32
    return %c0_i32, %c0_i32_0 : i32, i32
  }
  func.func @transform_3(%arg0: i32, %arg1: i32) -> (i32, i32) {
    %c0_i32 = arith.constant 0 : i32
    %c0_i32_0 = arith.constant 0 : i32
    %c0_i32_1 = arith.constant 0 : i32
    return %c0_i32, %c0_i32_0 : i32, i32
  }
  func.func @transform_4(%arg0: i32, %arg1: i32) -> (i32, i32) {
    %c0_i32 = arith.constant 0 : i32
    %c0_i32_0 = arith.constant 0 : i32
    %c0_i32_1 = arith.constant 0 : i32
    return %c0_i32, %c0_i32_0 : i32, i32
  }
  func.func @transform_5(%arg0: i32, %arg1: i32) -> (i32, i32) {
    %c0_i32 = arith.constant 0 : i32
    %c0_i32_0 = arith.constant 0 : i32
    %c0_i32_1 = arith.constant 0 : i32
    return %c0_i32, %c0_i32_0 : i32, i32
  }
  func.func @transform_6(%arg0: i32, %arg1: i32) -> (i32, i32) {
    %c0_i32 = arith.constant 0 : i32
    %c0_i32_0 = arith.constant 0 : i32
    %c0_i32_1 = arith.constant 0 : i32
    return %c0_i32, %c0_i32_0 : i32, i32
  }
  func.func @transform_7(%arg0: i32, %arg1: i32) -> (i32, i32) {
    %c0_i32 = arith.constant 0 : i32
    %c0_i32_0 = arith.constant 0 : i32
    %c0_i32_1 = arith.constant 0 : i32
    return %c0_i32, %c0_i32_0 : i32, i32
  }
  func.func @transform_8(%arg0: i32, %arg1: i32) -> (i32, i32) {
    %c0_i32 = arith.constant 0 : i32
    %c0_i32_0 = arith.constant 0 : i32
    %c0_i32_1 = arith.constant 0 : i32
    return %c0_i32, %c0_i32_0 : i32, i32
  }
  func.func @transform_9(%arg0: i32, %arg1: i32) -> (i32, i32) {
    %c0_i32 = arith.constant 0 : i32
    %c0_i32_0 = arith.constant 0 : i32
    %c0_i32_1 = arith.constant 0 : i32
    return %c0_i32, %c0_i32_0 : i32, i32
  }
  func.func @transform_10(%arg0: i32, %arg1: i32) -> (i32, i32) {
    %c0_i32 = arith.constant 0 : i32
    %c0_i32_0 = arith.constant 0 : i32
    %c0_i32_1 = arith.constant 0 : i32
    return %c0_i32, %c0_i32_0 : i32, i32
  }
  func.func @transform_11(%arg0: i32, %arg1: i32) -> (i32, i32) {
    %c0_i32 = arith.constant 0 : i32
    %c0_i32_0 = arith.constant 0 : i32
    %c0_i32_1 = arith.constant 0 : i32
    return %c0_i32, %c0_i32_0 : i32, i32
  }
  func.func @transform_12(%arg0: i32, %arg1: i32) -> (i32, i32) {
    %c0_i32 = arith.constant 0 : i32
    %c0_i32_0 = arith.constant 0 : i32
    %c0_i32_1 = arith.constant 0 : i32
    return %c0_i32, %c0_i32_0 : i32, i32
  }
  func.func @transform_13(%arg0: i32, %arg1: i32) -> (i32, i32) {
    %c0_i32 = arith.constant 0 : i32
    %c0_i32_0 = arith.constant 0 : i32
    %c0_i32_1 = arith.constant 0 : i32
    return %c0_i32, %c0_i32_0 : i32, i32
  }
  func.func @transform_14(%arg0: i32, %arg1: i32) -> (i32, i32, i32) {
    %c0_i32 = arith.constant 0 : i32
    %c0_i32_0 = arith.constant 0 : i32
    return %arg0, %c0_i32, %arg1 : i32, i32, i32
  }
}

</mosaic_0001>

<llo_original>
// kernel: upconv_concat_rrblock.1
$region0: #{upconv_concat_rrblock.1}
  #allocation0 [shape = 'u32[]', space=smem, size = 0x4, offset = 0x4, fixed_abs, tag = 'smem constant byte address 0x4 - core index']
  #allocation1 [shape = 'u32[72,128]{1,0:T(1,128)}', space=vmem, size = 0x9000, scoped, tag = 'internal scratch']
  %s0 = inlined_call_operand.vmem [shape: bf16[2,6,384], index: 0, kind: input, shape index: {}]
  %s1 = inlined_call_operand.vmem [shape: f32[2,6,1250], index: 1, kind: input, shape index: {}]
  %s2 = inlined_call_operand.hbm [shape: bf16[256,640], index: 2, kind: input, shape index: {}]
  %s3 = inlined_call_operand.vmem [shape: bf16[6,6], index: 3, kind: input, shape index: {}]
  %s4 = inlined_call_operand.vmem [shape: bf16[6,6], index: 4, kind: input, shape index: {}]
  %s5 = inlined_call_operand.vmem [shape: bf16[6,6], index: 5, kind: input, shape index: {}]
  %s6 = inlined_call_operand.vmem [shape: bf16[6,6], index: 6, kind: input, shape index: {}]
  %s7 = inlined_call_operand.vmem [shape: bf16[6,6], index: 7, kind: input, shape index: {}]
  %s8 = inlined_call_operand.vmem [shape: bf16[6,6], index: 8, kind: input, shape index: {}]
  %s9 = inlined_call_operand.vmem [shape: f32[6,1], index: 9, kind: input, shape index: {}]
  %s10 = inlined_call_operand.vmem [shape: f32[6,1], index: 10, kind: input, shape index: {}]
  %s11 = inlined_call_operand.vmem [shape: f32[6,1], index: 11, kind: input, shape index: {}]
  %s12 = inlined_call_operand.vmem [shape: f32[6,1], index: 12, kind: input, shape index: {}]
  %s13 = inlined_call_operand.vmem [shape: f32[6,1], index: 13, kind: input, shape index: {}]
  %s14 = inlined_call_operand.vmem [shape: bf16[2,6,1250], index: 14, kind: output, shape index: {}]
  %s15 = sld [smem:[#allocation0]]
  $region93: #{upconv_concat_rrblock.1} parent=0
    _
  %s17 = ssub.s32 1, %s15
  %s18 = scalar_select 0, %s17, %s15
  $region1: #{upconv_concat_rrblock.1} parent=0
    #allocation2 [shape = 'u8[327680]{0}', space=vmem, size = 0x50000, scoped, tag = 'input window, operand 2, single buffered']
    #allocation3 [shape = 's32[2]{0}', space=sflag, size = 0x8, scoped, tag = 'scoped memory for upconv_concat_rrblock.1']
    %19 = vsyncpa [#allocation3], 0
    loop: start=0, step=1, limit=6
    $region2: #{upconv_concat_rrblock.1} parent=1 // loop_pre_header
      _
    $region3: #{upconv_concat_rrblock.1} parent=1 // loop_header
      %s21 = sphi 0, %s25
      %p22 = scmp.ge.s32.totalorder %s21, 6
      %s28 = sphi 0, %s40
      %s29 = sphi 0, %s36
      %s30 = sphi 0, %s28
      %s31 = sphi 0, %s29
      %s32 = sphi 0, %s30
      %s33 = sphi 0, %s31
      %s43 = sphi 0, %s45
      %s46 = sphi 0, %s43
      %s47 = sphi 0, %s46
      %s63 = sphi 0, %s47
      %s71 = sphi 0, %s73
      %s74 = sphi 0, %s71
      %s75 = sphi 0, %s74
      %s91 = sphi 0, %s75
      %s95 = sphi 0, %s95
      %s97 = sphi 0, %s95
      %s98 = sphi 0, %s97
      %s112 = sphi 0, %s98
      %s116 = sphi 0, %s116
      %s118 = sphi 0, %s116
      %s119 = sphi 0, %s118
      %s133 = sphi 0, %s119
      %s137 = sphi 0, %s137
      %s139 = sphi 0, %s137
      %s140 = sphi 0, %s139
      %s154 = sphi 0, %s140
      %s158 = sphi 0, %s158
      %s160 = sphi 0, %s158
      %s161 = sphi 0, %s160
      %s175 = sphi 0, %s161
      %s179 = sphi 0, %s179
      %s181 = sphi 0, %s179
      %s182 = sphi 0, %s181
      %s196 = sphi 0, %s182
      %s200 = sphi 0, %s200
      %s202 = sphi 0, %s200
      %s203 = sphi 0, %s202
      %s217 = sphi 0, %s203
      %s221 = sphi 0, %s221
      %s223 = sphi 0, %s221
      %s224 = sphi 0, %s223
      %s238 = sphi 0, %s224
      %s242 = sphi 0, %s242
      %s244 = sphi 0, %s242
      %s245 = sphi 0, %s244
      %s259 = sphi 0, %s245
      %s263 = sphi 0, %s263
      %s265 = sphi 0, %s263
      %s266 = sphi 0, %s265
      %s280 = sphi 0, %s266
      %s284 = sphi 0, %s284
      %s286 = sphi 0, %s284
      %s287 = sphi 0, %s286
      %s301 = sphi 0, %s287
      %s305 = sphi 0, %s305
      %s307 = sphi 0, %s305
      %s308 = sphi 0, %s307
      %s322 = sphi 0, %s308
      %s326 = sphi 0, %s326
      %s328 = sphi 0, %s326
      %s329 = sphi 0, %s328
      %s343 = sphi 0, %s329
      %s351 = sphi 0, %s353
      %s354 = sphi 0, %s351
      %s355 = sphi 0, %s354
      %s371 = sphi 0, %s355
    $region4: #{upconv_concat_rrblock.1} parent=1 // loop_header_branch
      %24 = sbr.rel (%p22) target = $region8
    $region5: #{upconv_concat_rrblock.1} parent=1 // loop_body
      %s26 = ssub.s32 %s21, 1
      %s27 = ssub.s32 %s21, 2
      %s34 = sadd.s32 1, %s29
      %p35 = scmp.ge.s32.totalorder %s34, 2
      %s36 = scalar_select %p35, 0, %s34
      %s37 = sadd.s32 1, %s28
      %s38 = scalar_select %p35, %s37, %s28
      %p39 = scmp.ge.s32.totalorder %s38, 2
      %s40 = scalar_select %p39, 0, %s38
      %s41 = ssub.s32 %s28, %s40
      %p42 = scmp.eq.s32.totalorder %s41, 0
      %s44 = sadd.s32 %s43, 1
      %s45 = scalar_select %p42, %s43, %s44
      %p48 = pneg %p42
      %p49 = scmp.eq.s32.totalorder %s21, 3
      %p50 = por %p48, %p49
      %p51 = scmp.ne.s32.totalorder %s43, %s46
      %p52 = scmp.eq.s32.totalorder %s21, 0
      %p53 = por %p51, %p52
      %p54 = scmp.ne.s32.totalorder %s43, %s46
      %p55 = scmp.eq.s32.totalorder %s26, 3
      %p56 = por %p54, %p55
      %p57 = scmp.ne.s32.totalorder %s46, %s47
      %p58 = scmp.eq.s32.totalorder %s26, 0
      %p59 = por %p57, %p58
      %p60 = scmp.ne.s32.totalorder %s46, %s47
      %p61 = scmp.eq.s32.totalorder %s27, 3
      %p62 = por %p60, %p61
      %p64 = scmp.ne.s32.totalorder %s47, %s63
      %p65 = scmp.eq.s32.totalorder %s27, 0
      %p66 = por %p64, %p65
      %s67 = ssub.s32 %s28, %s40
      %s68 = ssub.s32 %s29, %s36
      %s69 = sor.u32 %s67, %s68
      %p70 = scmp.eq.s32.totalorder %s69, 0
      %s72 = sadd.s32 %s71, 1
      %s73 = scalar_select %p70, %s71, %s72
      %p76 = pneg %p70
      %p77 = scmp.eq.s32.totalorder %s21, 3
      %p78 = por %p76, %p77
      %p79 = scmp.ne.s32.totalorder %s71, %s74
      %p80 = scmp.eq.s32.totalorder %s21, 0
      %p81 = por %p79, %p80
      %p82 = scmp.ne.s32.totalorder %s71, %s74
      %p83 = scmp.eq.s32.totalorder %s26, 3
      %p84 = por %p82, %p83
      %p85 = scmp.ne.s32.totalorder %s74, %s75
      %p86 = scmp.eq.s32.totalorder %s26, 0
      %p87 = por %p85, %p86
      %p88 = scmp.ne.s32.totalorder %s74, %s75
      %p89 = scmp.eq.s32.totalorder %s27, 3
      %p90 = por %p88, %p89
      %p92 = scmp.ne.s32.totalorder %s75, %s91
      %p93 = scmp.eq.s32.totalorder %s27, 0
      %p94 = por %p92, %p93
      %s96 = sadd.s32 %s95, 1
      %p99 = scmp.eq.s32.totalorder %s21, 3
      %p100 = scmp.ne.s32.totalorder %s95, %s97
      %p101 = scmp.eq.s32.totalorder %s21, 0
      %p102 = por %p100, %p101
      %p103 = scmp.ne.s32.totalorder %s95, %s97
      %p104 = scmp.eq.s32.totalorder %s26, 3
      %p105 = por %p103, %p104
      %p106 = scmp.ne.s32.totalorder %s97, %s98
      %p107 = scmp.eq.s32.totalorder %s26, 0
      %p108 = por %p106, %p107
      %p109 = scmp.ne.s32.totalorder %s97, %s98
      %p110 = scmp.eq.s32.totalorder %s27, 3
      %p111 = por %p109, %p110
      %p113 = scmp.ne.s32.totalorder %s98, %s112
      %p114 = scmp.eq.s32.totalorder %s27, 0
      %p115 = por %p113, %p114
      %s117 = sadd.s32 %s116, 1
      %p120 = scmp.eq.s32.totalorder %s21, 3
      %p121 = scmp.ne.s32.totalorder %s116, %s118
      %p122 = scmp.eq.s32.totalorder %s21, 0
      %p123 = por %p121, %p122
      %p124 = scmp.ne.s32.totalorder %s116, %s118
      %p125 = scmp.eq.s32.totalorder %s26, 3
      %p126 = por %p124, %p125
      %p127 = scmp.ne.s32.totalorder %s118, %s119
      %p128 = scmp.eq.s32.totalorder %s26, 0
      %p129 = por %p127, %p128
      %p130 = scmp.ne.s32.totalorder %s118, %s119
      %p131 = scmp.eq.s32.totalorder %s27, 3
      %p132 = por %p130, %p131
      %p134 = scmp.ne.s32.totalorder %s119, %s133
      %p135 = scmp.eq.s32.totalorder %s27, 0
      %p136 = por %p134, %p135
      %s138 = sadd.s32 %s137, 1
      %p141 = scmp.eq.s32.totalorder %s21, 3
      %p142 = scmp.ne.s32.totalorder %s137, %s139
      %p143 = scmp.eq.s32.totalorder %s21, 0
      %p144 = por %p142, %p143
      %p145 = scmp.ne.s32.totalorder %s137, %s139
      %p146 = scmp.eq.s32.totalorder %s26, 3
      %p147 = por %p145, %p146
      %p148 = scmp.ne.s32.totalorder %s139, %s140
      %p149 = scmp.eq.s32.totalorder %s26, 0
      %p150 = por %p148, %p149
      %p151 = scmp.ne.s32.totalorder %s139, %s140
      %p152 = scmp.eq.s32.totalorder %s27, 3
      %p153 = por %p151, %p152
      %p155 = scmp.ne.s32.totalorder %s140, %s154
      %p156 = scmp.eq.s32.totalorder %s27, 0
      %p157 = por %p155, %p156
      %s159 = sadd.s32 %s158, 1
      %p162 = scmp.eq.s32.totalorder %s21, 3
      %p163 = scmp.ne.s32.totalorder %s158, %s160
      %p164 = scmp.eq.s32.totalorder %s21, 0
      %p165 = por %p163, %p164
      %p166 = scmp.ne.s32.totalorder %s158, %s160
      %p167 = scmp.eq.s32.totalorder %s26, 3
      %p168 = por %p166, %p167
      %p169 = scmp.ne.s32.totalorder %s160, %s161
      %p170 = scmp.eq.s32.totalorder %s26, 0
      %p171 = por %p169, %p170
      %p172 = scmp.ne.s32.totalorder %s160, %s161
      %p173 = scmp.eq.s32.totalorder %s27, 3
      %p174 = por %p172, %p173
      %p176 = scmp.ne.s32.totalorder %s161, %s175
      %p177 = scmp.eq.s32.totalorder %s27, 0
      %p178 = por %p176, %p177
      %s180 = sadd.s32 %s179, 1
      %p183 = scmp.eq.s32.totalorder %s21, 3
      %p184 = scmp.ne.s32.totalorder %s179, %s181
      %p185 = scmp.eq.s32.totalorder %s21, 0
      %p186 = por %p184, %p185
      %p187 = scmp.ne.s32.totalorder %s179, %s181
      %p188 = scmp.eq.s32.totalorder %s26, 3
      %p189 = por %p187, %p188
      %p190 = scmp.ne.s32.totalorder %s181, %s182
      %p191 = scmp.eq.s32.totalorder %s26, 0
      %p192 = por %p190, %p191
      %p193 = scmp.ne.s32.totalorder %s181, %s182
      %p194 = scmp.eq.s32.totalorder %s27, 3
      %p195 = por %p193, %p194
      %p197 = scmp.ne.s32.totalorder %s182, %s196
      %p198 = scmp.eq.s32.totalorder %s27, 0
      %p199 = por %p197, %p198
      %s201 = sadd.s32 %s200, 1
      %p204 = scmp.eq.s32.totalorder %s21, 3
      %p205 = scmp.ne.s32.totalorder %s200, %s202
      %p206 = scmp.eq.s32.totalorder %s21, 0
      %p207 = por %p205, %p206
      %p208 = scmp.ne.s32.totalorder %s200, %s202
      %p209 = scmp.eq.s32.totalorder %s26, 3
      %p210 = por %p208, %p209
      %p211 = scmp.ne.s32.totalorder %s202, %s203
      %p212 = scmp.eq.s32.totalorder %s26, 0
      %p213 = por %p211, %p212
      %p214 = scmp.ne.s32.totalorder %s202, %s203
      %p215 = scmp.eq.s32.totalorder %s27, 3
      %p216 = por %p214, %p215
      %p218 = scmp.ne.s32.totalorder %s203, %s217
      %p219 = scmp.eq.s32.totalorder %s27, 0
      %p220 = por %p218, %p219
      %s222 = sadd.s32 %s221, 1
      %p225 = scmp.eq.s32.totalorder %s21, 3
      %p226 = scmp.ne.s32.totalorder %s221, %s223
      %p227 = scmp.eq.s32.totalorder %s21, 0
      %p228 = por %p226, %p227
      %p229 = scmp.ne.s32.totalorder %s221, %s223
      %p230 = scmp.eq.s32.totalorder %s26, 3
      %p231 = por %p229, %p230
      %p232 = scmp.ne.s32.totalorder %s223, %s224
      %p233 = scmp.eq.s32.totalorder %s26, 0
      %p234 = por %p232, %p233
      %p235 = scmp.ne.s32.totalorder %s223, %s224
      %p236 = scmp.eq.s32.totalorder %s27, 3
      %p237 = por %p235, %p236
      %p239 = scmp.ne.s32.totalorder %s224, %s238
      %p240 = scmp.eq.s32.totalorder %s27, 0
      %p241 = por %p239, %p240
      %s243 = sadd.s32 %s242, 1
      %p246 = scmp.eq.s32.totalorder %s21, 3
      %p247 = scmp.ne.s32.totalorder %s242, %s244
      %p248 = scmp.eq.s32.totalorder %s21, 0
      %p249 = por %p247, %p248
      %p250 = scmp.ne.s32.totalorder %s242, %s244
      %p251 = scmp.eq.s32.totalorder %s26, 3
      %p252 = por %p250, %p251
      %p253 = scmp.ne.s32.totalorder %s244, %s245
      %p254 = scmp.eq.s32.totalorder %s26, 0
      %p255 = por %p253, %p254
      %p256 = scmp.ne.s32.totalorder %s244, %s245
      %p257 = scmp.eq.s32.totalorder %s27, 3
      %p258 = por %p256, %p257
      %p260 = scmp.ne.s32.totalorder %s245, %s259
      %p261 = scmp.eq.s32.totalorder %s27, 0
      %p262 = por %p260, %p261
      %s264 = sadd.s32 %s263, 1
      %p267 = scmp.eq.s32.totalorder %s21, 3
      %p268 = scmp.ne.s32.totalorder %s263, %s265
      %p269 = scmp.eq.s32.totalorder %s21, 0
      %p270 = por %p268, %p269
      %p271 = scmp.ne.s32.totalorder %s263, %s265
      %p272 = scmp.eq.s32.totalorder %s26, 3
      %p273 = por %p271, %p272
      %p274 = scmp.ne.s32.totalorder %s265, %s266
      %p275 = scmp.eq.s32.totalorder %s26, 0
      %p276 = por %p274, %p275
      %p277 = scmp.ne.s32.totalorder %s265, %s266
      %p278 = scmp.eq.s32.totalorder %s27, 3
      %p279 = por %p277, %p278
      %p281 = scmp.ne.s32.totalorder %s266, %s280
      %p282 = scmp.eq.s32.totalorder %s27, 0
      %p283 = por %p281, %p282
      %s285 = sadd.s32 %s284, 1
      %p288 = scmp.eq.s32.totalorder %s21, 3
      %p289 = scmp.ne.s32.totalorder %s284, %s286
      %p290 = scmp.eq.s32.totalorder %s21, 0
      %p291 = por %p289, %p290
      %p292 = scmp.ne.s32.totalorder %s284, %s286
      %p293 = scmp.eq.s32.totalorder %s26, 3
      %p294 = por %p292, %p293
      %p295 = scmp.ne.s32.totalorder %s286, %s287
      %p296 = scmp.eq.s32.totalorder %s26, 0
      %p297 = por %p295, %p296
      %p298 = scmp.ne.s32.totalorder %s286, %s287
      %p299 = scmp.eq.s32.totalorder %s27, 3
      %p300 = por %p298, %p299
      %p302 = scmp.ne.s32.totalorder %s287, %s301
      %p303 = scmp.eq.s32.totalorder %s27, 0
      %p304 = por %p302, %p303
      %s306 = sadd.s32 %s305, 1
      %p309 = scmp.eq.s32.totalorder %s21, 3
      %p310 = scmp.ne.s32.totalorder %s305, %s307
      %p311 = scmp.eq.s32.totalorder %s21, 0
      %p312 = por %p310, %p311
      %p313 = scmp.ne.s32.totalorder %s305, %s307
      %p314 = scmp.eq.s32.totalorder %s26, 3
      %p315 = por %p313, %p314
      %p316 = scmp.ne.s32.totalorder %s307, %s308
      %p317 = scmp.eq.s32.totalorder %s26, 0
      %p318 = por %p316, %p317
      %p319 = scmp.ne.s32.totalorder %s307, %s308
      %p320 = scmp.eq.s32.totalorder %s27, 3
      %p321 = por %p319, %p320
      %p323 = scmp.ne.s32.totalorder %s308, %s322
      %p324 = scmp.eq.s32.totalorder %s27, 0
      %p325 = por %p323, %p324
      %s327 = sadd.s32 %s326, 1
      %p330 = scmp.eq.s32.totalorder %s21, 3
      %p331 = scmp.ne.s32.totalorder %s326, %s328
      %p332 = scmp.eq.s32.totalorder %s21, 0
      %p333 = por %p331, %p332
      %p334 = scmp.ne.s32.totalorder %s326, %s328
      %p335 = scmp.eq.s32.totalorder %s26, 3
      %p336 = por %p334, %p335
      %p337 = scmp.ne.s32.totalorder %s328, %s329
      %p338 = scmp.eq.s32.totalorder %s26, 0
      %p339 = por %p337, %p338
      %p340 = scmp.ne.s32.totalorder %s328, %s329
      %p341 = scmp.eq.s32.totalorder %s27, 3
      %p342 = por %p340, %p341
      %p344 = scmp.ne.s32.totalorder %s329, %s343
      %p345 = scmp.eq.s32.totalorder %s27, 0
      %p346 = por %p344, %p345
      %s347 = ssub.s32 %s28, %s40
      %s348 = ssub.s32 %s29, %s36
      %s349 = sor.u32 %s347, %s348
      %p350 = scmp.eq.s32.totalorder %s349, 0
      %s352 = sadd.s32 %s351, 1
      %s353 = scalar_select %p350, %s351, %s352
      %p356 = pneg %p350
      %p357 = scmp.eq.s32.totalorder %s21, 3
      %p358 = por %p356, %p357
      %p359 = scmp.ne.s32.totalorder %s351, %s354
      %p360 = scmp.eq.s32.totalorder %s21, 0
      %p361 = por %p359, %p360
      %p362 = scmp.ne.s32.totalorder %s351, %s354
      %p363 = scmp.eq.s32.totalorder %s26, 3
      %p364 = por %p362, %p363
      %p365 = scmp.ne.s32.totalorder %s354, %s355
      %p366 = scmp.eq.s32.totalorder %s26, 0
      %p367 = por %p365, %p366
      %p368 = scmp.ne.s32.totalorder %s354, %s355
      %p369 = scmp.eq.s32.totalorder %s27, 3
      %p370 = por %p368, %p369
      %p372 = scmp.ne.s32.totalorder %s355, %s371
      %p373 = scmp.eq.s32.totalorder %s27, 0
      %p374 = por %p372, %p373
      %p375 = scmp.le.s32.totalorder 1, %s21
      %p376 = scmp.lt.s32.totalorder %s21, 5
      %p377 = pnand %p375, %p376
      %p378 = pneg %p377
      // Predicated region
      $region9: #{upconv_concat_rrblock.1} parent=5 // pred_check
        _
      $region10: #{upconv_concat_rrblock.1} parent=5 // pred_check_branch
        %380 = sbr.rel (%p377) target = $region12
      $region11: #{upconv_concat_rrblock.1} parent=5 // pred_region
        %s381 = ssub.s32 %s21, 1
        // Predicated region
        $region13: #{upconv_concat_rrblock.1} parent=11 // pred_check
          %p382 = pneg %p108
        $region14: #{upconv_concat_rrblock.1} parent=11 // pred_check_branch
          %384 = sbr.rel (%p382) target = $region16
        $region15: #{upconv_concat_rrblock.1} parent=11 // pred_region
          %386 = vsyncadd [#allocation3], 0
          %s387 = sshll.u32 %s2, 4
          %s388 = int_to_ptr.hbm [resolvable:$true] %s387
          %s389 = sshll.u32 [#allocation2], 4
          %s390 = int_to_ptr.vmem [resolvable:$true] %s389
          %395 = dma.hbm_to_vmem [thread:$0]  %s388, 10240, %s390, [#allocation3], 320, 320, 20
        $region16: #{upconv_concat_rrblock.1} parent=11 // pred_fallthru
          _
        // Predicated region
        $region17: #{upconv_concat_rrblock.1} parent=11 // pred_check
          %p396 = pneg %p129
        $region18: #{upconv_concat_rrblock.1} parent=11 // pred_check_branch
          %398 = sbr.rel (%p396) target = $region20
        $region19: #{upconv_concat_rrblock.1} parent=11 // pred_region
          _
        $region20: #{upconv_concat_rrblock.1} parent=11 // pred_fallthru
          _
        // Predicated region
        $region21: #{upconv_concat_rrblock.1} parent=11 // pred_check
          %p399 = pneg %p150
        $region22: #{upconv_concat_rrblock.1} parent=11 // pred_check_branch
          %401 = sbr.rel (%p399) target = $region24
        $region23: #{upconv_concat_rrblock.1} parent=11 // pred_region
          _
        $region24: #{upconv_concat_rrblock.1} parent=11 // pred_fallthru
          _
        // Predicated region
        $region25: #{upconv_concat_rrblock.1} parent=11 // pred_check
          %p402 = pneg %p171
        $region26: #{upconv_concat_rrblock.1} parent=11 // pred_check_branch
          %404 = sbr.rel (%p402) target = $region28
        $region27: #{upconv_concat_rrblock.1} parent=11 // pred_region
          _
        $region28: #{upconv_concat_rrblock.1} parent=11 // pred_fallthru
          _
        // Predicated region
        $region29: #{upconv_concat_rrblock.1} parent=11 // pred_check
          %p405 = pneg %p192
        $region30: #{upconv_concat_rrblock.1} parent=11 // pred_check_branch
          %407 = sbr.rel (%p405) target = $region32
        $region31: #{upconv_concat_rrblock.1} parent=11 // pred_region
          _
        $region32: #{upconv_concat_rrblock.1} parent=11 // pred_fallthru
          _
        // Predicated region
        $region33: #{upconv_concat_rrblock.1} parent=11 // pred_check
          %p408 = pneg %p213
        $region34: #{upconv_concat_rrblock.1} parent=11 // pred_check_branch
          %410 = sbr.rel (%p408) target = $region36
        $region35: #{upconv_concat_rrblock.1} parent=11 // pred_region
          _
        $region36: #{upconv_concat_rrblock.1} parent=11 // pred_fallthru
          _
        // Predicated region
        $region37: #{upconv_concat_rrblock.1} parent=11 // pred_check
          %p411 = pneg %p234
        $region38: #{upconv_concat_rrblock.1} parent=11 // pred_check_branch
          %413 = sbr.rel (%p411) target = $region40
        $region39: #{upconv_concat_rrblock.1} parent=11 // pred_region
          _
        $region40: #{upconv_concat_rrblock.1} parent=11 // pred_fallthru
          _
        // Predicated region
        $region41: #{upconv_concat_rrblock.1} parent=11 // pred_check
          %p414 = pneg %p255
        $region42: #{upconv_concat_rrblock.1} parent=11 // pred_check_branch
          %416 = sbr.rel (%p414) target = $region44
        $region43: #{upconv_concat_rrblock.1} parent=11 // pred_region
          _
        $region44: #{upconv_concat_rrblock.1} parent=11 // pred_fallthru
          _
        // Predicated region
        $region45: #{upconv_concat_rrblock.1} parent=11 // pred_check
          %p417 = pneg %p276
        $region46: #{upconv_concat_rrblock.1} parent=11 // pred_check_branch
          %419 = sbr.rel (%p417) target = $region48
        $region47: #{upconv_concat_rrblock.1} parent=11 // pred_region
          _
        $region48: #{upconv_concat_rrblock.1} parent=11 // pred_fallthru
          _
        // Predicated region
        $region49: #{upconv_concat_rrblock.1} parent=11 // pred_check
          %p420 = pneg %p297
        $region50: #{upconv_concat_rrblock.1} parent=11 // pred_check_branch
          %422 = sbr.rel (%p420) target = $region52
        $region51: #{upconv_concat_rrblock.1} parent=11 // pred_region
          _
        $region52: #{upconv_concat_rrblock.1} parent=11 // pred_fallthru
          _
        // Predicated region
        $region53: #{upconv_concat_rrblock.1} parent=11 // pred_check
          %p423 = pneg %p318
        $region54: #{upconv_concat_rrblock.1} parent=11 // pred_check_branch
          %425 = sbr.rel (%p423) target = $region56
        $region55: #{upconv_concat_rrblock.1} parent=11 // pred_region
          _
        $region56: #{upconv_concat_rrblock.1} parent=11 // pred_fallthru
          _
        // Predicated region
        $region57: #{upconv_concat_rrblock.1} parent=11 // pred_check
          %p426 = pneg %p339
        $region58: #{upconv_concat_rrblock.1} parent=11 // pred_check_branch
          %428 = sbr.rel (%p426) target = $region60
        $region59: #{upconv_concat_rrblock.1} parent=11 // pred_region
          _
        $region60: #{upconv_concat_rrblock.1} parent=11 // pred_fallthru
          _
      $region12: #{upconv_concat_rrblock.1} parent=5 // pred_fallthru
        _
      %p429 = scmp.lt.s32.totalorder %s21, 4
      // Predicated region
      $region61: #{upconv_concat_rrblock.1} parent=5 // pred_check
        %p430 = pneg %p429
      $region62: #{upconv_concat_rrblock.1} parent=5 // pred_check_branch
        %432 = sbr.rel (%p430) target = $region64
      $region63: #{upconv_concat_rrblock.1} parent=5 // pred_region
        // Predicated region
        $region65: #{upconv_concat_rrblock.1} parent=63 // pred_check
          %p433 = pneg %p53
        $region66: #{upconv_concat_rrblock.1} parent=63 // pred_check_branch
          %435 = sbr.rel (%p433) target = $region68
        $region67: #{upconv_concat_rrblock.1} parent=63 // pred_region
          %p436 = scmp.lt.s32.totalorder %s28, 1
          %s437 = scalar_select %p436, %s28, 1
          %s438 = smul.addr %s437, 3
          %s439 = smul.addr %s438, 4
          %s440 = scalar_lea.vmem %s0, %s439
        $region68: #{upconv_concat_rrblock.1} parent=63 // pred_fallthru
          _
        // Predicated region
        $region69: #{upconv_concat_rrblock.1} parent=63 // pred_check
          %p441 = pneg %p81
        $region70: #{upconv_concat_rrblock.1} parent=63 // pred_check_branch
          %443 = sbr.rel (%p441) target = $region72
        $region71: #{upconv_concat_rrblock.1} parent=63 // pred_region
          %s444 = smul.u32 5, %s29
          %p445 = scmp.lt.s32.totalorder %s28, 1
          %s446 = scalar_select %p445, %s28, 1
          %p447 = scmp.lt.s32.totalorder %s444, 9
          %s448 = scalar_select %p447, %s444, 9
          %s449 = smul.addr %s446, 10
          %s450 = sadd.s32 %s448, %s449
          %s451 = smul.addr %s450, 8
          %s452 = scalar_lea.vmem %s1, %s451
          %s453 = smul.u32 5, %s29
        $region72: #{upconv_concat_rrblock.1} parent=63 // pred_fallthru
          _
      $region64: #{upconv_concat_rrblock.1} parent=5 // pred_fallthru
        _
      %p454 = scmp.le.s32.totalorder 1, %s21
      %p455 = scmp.lt.s32.totalorder %s21, 5
      %p456 = pnand %p454, %p455
      %p457 = pneg %p456
      // Predicated region
      $region73: #{upconv_concat_rrblock.1} parent=5 // pred_check
        _
      $region74: #{upconv_concat_rrblock.1} parent=5 // pred_check_branch
        %459 = sbr.rel (%p456) target = $region76
      $region75: #{upconv_concat_rrblock.1} parent=5 // pred_region
        %s460 = ssub.s32 %s21, 1
        // Predicated region
        $region77: #{upconv_concat_rrblock.1} parent=75 // pred_check
          %p461 = pneg %p108
        $region78: #{upconv_concat_rrblock.1} parent=75 // pred_check_branch
          %463 = sbr.rel (%p461) target = $region80
        $region79: #{upconv_concat_rrblock.1} parent=75 // pred_region
          %465 = dma.done [#allocation3], 10240
        $region80: #{upconv_concat_rrblock.1} parent=75 // pred_fallthru
          _
        %p466 = scmp.lt.s32.totalorder %s30, 1
        %s467 = scalar_select %p466, %s30, 1
        %s468 = smul.addr %s467, 3
        %s469 = smul.addr %s468, 4
        %s470 = scalar_lea.vmem %s0, %s469
        %p471 = pneg %p59
        %p472 = pneg %p56
        %s473 = smul.u32 5, %s31
        %p474 = scmp.lt.s32.totalorder %s30, 1
        %s475 = scalar_select %p474, %s30, 1
        %p476 = scmp.lt.s32.totalorder %s473, 9
        %s477 = scalar_select %p476, %s473, 9
        %s478 = smul.addr %s475, 10
        %s479 = sadd.s32 %s477, %s478
        %s480 = smul.addr %s479, 8
        %s481 = scalar_lea.vmem %s1, %s480
        %p482 = pneg %p87
        %p483 = pneg %p84
        %p484 = pneg %p108
        %p485 = pneg %p105
        %p486 = pneg %p129
        %p487 = pneg %p126
        %p488 = pneg %p150
        %p489 = pneg %p147
        %p490 = pneg %p171
        %p491 = pneg %p168
        %p492 = pneg %p192
        %p493 = pneg %p189
        %p494 = pneg %p213
        %p495 = pneg %p210
        %p496 = pneg %p234
        %p497 = pneg %p231
        %p498 = pneg %p255
        %p499 = pneg %p252
        %p500 = pneg %p276
        %p501 = pneg %p273
        %p502 = pneg %p297
        %p503 = pneg %p294
        %p504 = pneg %p318
        %p505 = pneg %p315
        %p506 = pneg %p339
        %p507 = pneg %p336
        %p508 = pneg %p367
        %p509 = pneg %p364
        %s510 = smul.u32 5, %s31
        %p511 = scmp.lt.s32.totalorder %s30, 1
        %s512 = scalar_select %p511, %s30, 1
        %p513 = scmp.lt.s32.totalorder %s510, 9
        %s514 = scalar_select %p513, %s510, 9
        %s515 = smul.addr %s512, 10
        %s516 = sadd.s32 %s514, %s515
        %s517 = smul.addr %s516, 4
        %s518 = scalar_lea.vmem %s14, %s517
        %p519 = scmp.lt.s32.totalorder %s30, 1
        %s520 = scalar_select %p519, %s30, 1
        %s521 = smul.addr %s520, 3
        %s522 = smul.addr %s521, 4
        %s523 = scalar_lea.vmem %s0, %s522
        %s524 = smul.u32 5, %s31
        %p525 = scmp.lt.s32.totalorder %s30, 1
        %s526 = scalar_select %p525, %s30, 1
        %p527 = scmp.lt.s32.totalorder %s524, 9
        %s528 = scalar_select %p527, %s524, 9
        %s529 = smul.addr %s526, 10
        %s530 = sadd.s32 %s528, %s529
        %s531 = smul.addr %s530, 8
        %s532 = scalar_lea.vmem %s1, %s531
        %s533 = smul.u32 5, %s31
        %s534 = smul.u32 5, %s31
        %p535 = scmp.lt.s32.totalorder %s30, 1
        %s536 = scalar_select %p535, %s30, 1
        %p537 = scmp.lt.s32.totalorder %s534, 9
        %s538 = scalar_select %p537, %s534, 9
        %s539 = smul.addr %s536, 10
        %s540 = sadd.s32 %s538, %s539
        %s541 = smul.addr %s540, 4
        %s542 = scalar_lea.vmem %s14, %s541
        %s543 = smul.u32 5, %s31
        %s545 = smul.u32 %s31, 128
        %s546 = sshra.s32 %s545, 7
        %s547 = sand.u32 %s545, 127
        %s548 = smul.addr %s546, 4
        %s549 = scalar_lea.vmem %s523, %s548
        %v550 = vld [vmem:[%s549] sm:$0x77]
        %v551 = vld [vmem:[%s3] sm:$0x7]
        %v552 = vld [vmem:[%s9] sm:$0x3f]
        %554 = vset.pattern.permute.xlu0 0
        %555 = vperm.xlu0 %554, %v552
        %v556 = vpop.permute.xlu0 %555
        %v559 = vunpack.c.l.b16 %v550
        %v560 = vunpack.c.h.b16 %v550
        %v561 = vpack.c.b16 %v559, %v559
        %v562 = vpack.c.b16 %v560, %v560
        %vm563 = vcmask 48128
        %v565 = vsel %vm563, %v551, 0
        %vm567 = vcmask 1042432
        %v569 = vsel %vm567, %v561, 0
        %v572 = vsel %vm567, %v562, 0
        %574 = vmatpush.bf16.msra.mxu0 0
        %575 = vmatpush.bf16.msra.mxu0 0
        %576 = vmatpush.bf16.msra.mxu0 0
        %577 = vmatpush.bf16.msra.mxu0 0
        %578 = vmatpush.bf16.msra.mxu0 0
        %579 = vmatpush.bf16.msra.mxu0 0
        %580 = vmatpush.bf16.msra.mxu0 0
        %581 = vmatpush.bf16.msra.mxu0 %v569
        %582 = vmatmul.bf16.gmra.mxu0 %v565
        %v583 = vpop.f32.mrf.mxu0
        %v584 = vadd.f32 %v556, %v583
        %v585 = vpop.f32.mrf.mxu0
        %586 = vdwg.mxu0
        %587 = vmatpush.bf16.msra.mxu0 0
        %588 = vmatpush.bf16.msra.mxu0 0
        %589 = vmatpush.bf16.msra.mxu0 0
        %590 = vmatpush.bf16.msra.mxu0 0
        %591 = vmatpush.bf16.msra.mxu0 0
        %592 = vmatpush.bf16.msra.mxu0 0
        %593 = vmatpush.bf16.msra.mxu0 0
        %594 = vmatpush.bf16.msra.mxu0 %v572
        %595 = vmatmul.bf16.gmra.mxu0 %v565
        %v596 = vpop.f32.mrf.mxu0
        %v597 = vadd.f32 %v556, %v596
        %v598 = vpop.f32.mrf.mxu0
        %599 = vdwg.mxu0
        %v600 = vmax.f32 %v584, 0.0
        %v601 = vmax.f32 %v597, 0.0
        %v602 = vpack.c.bf16 %v600, %v600
        %v603 = vpack.c.bf16 %v601, %v601
        %v604 = vld [vmem:[#allocation2] sm:$0xff]
        %v605 = vld [vmem:[#allocation2 + $0x8] sm:$0xff]
        %v606 = vld [vmem:[#allocation2 + $0x10] sm:$0xf]
        %v607 = vld [vmem:[#allocation2 + $0x14] sm:$0xff]
        %v608 = vld [vmem:[#allocation2 + $0x1c] sm:$0xff]
        %v609 = vld [vmem:[#allocation2 + $0x24] sm:$0xf]
        %v610 = vld [vmem:[#allocation2 + $0x28] sm:$0xff]
        %v611 = vld [vmem:[#allocation2 + $0x30] sm:$0xff]
        %v612 = vld [vmem:[#allocation2 + $0x38] sm:$0xf]
        %v613 = vld [vmem:[#allocation2 + $0x3c] sm:$0xff]
        %v614 = vld [vmem:[#allocation2 + $0x44] sm:$0xff]
        %v615 = vld [vmem:[#allocation2 + $0x4c] sm:$0xf]
        %v616 = vld [vmem:[#allocation2 + $0x50] sm:$0xff]
        %v617 = vld [vmem:[#allocation2 + $0x58] sm:$0xff]
        %v618 = vld [vmem:[#allocation2 + $0x60] sm:$0xf]
        %v619 = vld [vmem:[#allocation2 + $0x64] sm:$0xff]
        %v620 = vld [vmem:[#allocation2 + $0x6c] sm:$0xff]
        %v621 = vld [vmem:[#allocation2 + $0x74] sm:$0xf]
        %v622 = vld [vmem:[#allocation2 + $0x78] sm:$0xff]
        %v623 = vld [vmem:[#allocation2 + $0x80] sm:$0xff]
        %v624 = vld [vmem:[#allocation2 + $0x88] sm:$0xf]
        %v625 = vld [vmem:[#allocation2 + $0x8c] sm:$0xff]
        %v626 = vld [vmem:[#allocation2 + $0x94] sm:$0xff]
        %v627 = vld [vmem:[#allocation2 + $0x9c] sm:$0xf]
        %v628 = vld [vmem:[#allocation2 + $0xa0] sm:$0xff]
        %v629 = vld [vmem:[#allocation2 + $0xa8] sm:$0xff]
        %v630 = vld [vmem:[#allocation2 + $0xb0] sm:$0xf]
        %v631 = vld [vmem:[#allocation2 + $0xb4] sm:$0xff]
        %v632 = vld [vmem:[#allocation2 + $0xbc] sm:$0xff]
        %v633 = vld [vmem:[#allocation2 + $0xc4] sm:$0xf]
        %v634 = vld [vmem:[#allocation2 + $0xc8] sm:$0xff]
        %v635 = vld [vmem:[#allocation2 + $0xd0] sm:$0xff]
        %v636 = vld [vmem:[#allocation2 + $0xd8] sm:$0xf]
        %v637 = vld [vmem:[#allocation2 + $0xdc] sm:$0xff]
        %v638 = vld [vmem:[#allocation2 + $0xe4] sm:$0xff]
        %v639 = vld [vmem:[#allocation2 + $0xec] sm:$0xf]
        %v640 = vld [vmem:[#allocation2 + $0xf0] sm:$0xff]
        %v641 = vld [vmem:[#allocation2 + $0xf8] sm:$0xff]
        %v642 = vld [vmem:[#allocation2 + $0x100] sm:$0xf]
        %v643 = vld [vmem:[#allocation2 + $0x104] sm:$0xff]
        %v644 = vld [vmem:[#allocation2 + $0x10c] sm:$0xff]
        %v645 = vld [vmem:[#allocation2 + $0x114] sm:$0xf]
        %v646 = vld [vmem:[#allocation2 + $0x118] sm:$0xff]
        %v647 = vld [vmem:[#allocation2 + $0x120] sm:$0xff]
        %v648 = vld [vmem:[#allocation2 + $0x128] sm:$0xf]
        %v649 = vld [vmem:[#allocation2 + $0x12c] sm:$0xff]
        %v650 = vld [vmem:[#allocation2 + $0x134] sm:$0xff]
        %v651 = vld [vmem:[#allocation2 + $0x13c] sm:$0xf]
        %v652 = vld [vmem:[#allocation2 + $0x140] sm:$0xff]
        %v653 = vld [vmem:[#allocation2 + $0x148] sm:$0xff]
        %v654 = vld [vmem:[#allocation2 + $0x150] sm:$0xf]
        %v655 = vld [vmem:[#allocation2 + $0x154] sm:$0xff]
        %v656 = vld [vmem:[#allocation2 + $0x15c] sm:$0xff]
        %v657 = vld [vmem:[#allocation2 + $0x164] sm:$0xf]
        %v658 = vld [vmem:[#allocation2 + $0x168] sm:$0xff]
        %v659 = vld [vmem:[#allocation2 + $0x170] sm:$0xff]
        %v660 = vld [vmem:[#allocation2 + $0x178] sm:$0xf]
        %v661 = vld [vmem:[#allocation2 + $0x17c] sm:$0xff]
        %v662 = vld [vmem:[#allocation2 + $0x184] sm:$0xff]
        %v663 = vld [vmem:[#allocation2 + $0x18c] sm:$0xf]
        %v664 = vld [vmem:[#allocation2 + $0x190] sm:$0xff]
        %v665 = vld [vmem:[#allocation2 + $0x198] sm:$0xff]
        %v666 = vld [vmem:[#allocation2 + $0x1a0] sm:$0xf]
        %v667 = vld [vmem:[#allocation2 + $0x1a4] sm:$0xff]
        %v668 = vld [vmem:[#allocation2 + $0x1ac] sm:$0xff]
        %v669 = vld [vmem:[#allocation2 + $0x1b4] sm:$0xf]
        %v670 = vld [vmem:[#allocation2 + $0x1b8] sm:$0xff]
        %v671 = vld [vmem:[#allocation2 + $0x1c0] sm:$0xff]
        %v672 = vld [vmem:[#allocation2 + $0x1c8] sm:$0xf]
        %v673 = vld [vmem:[#allocation2 + $0x1cc] sm:$0xff]
        %v674 = vld [vmem:[#allocation2 + $0x1d4] sm:$0xff]
        %v675 = vld [vmem:[#allocation2 + $0x1dc] sm:$0xf]
        %v676 = vld [vmem:[#allocation2 + $0x1e0] sm:$0xff]
        %v677 = vld [vmem:[#allocation2 + $0x1e8] sm:$0xff]
        %v678 = vld [vmem:[#allocation2 + $0x1f0] sm:$0xf]
        %v679 = vld [vmem:[#allocation2 + $0x1f4] sm:$0xff]
        %v680 = vld [vmem:[#allocation2 + $0x1fc] sm:$0xff]
        %v681 = vld [vmem:[#allocation2 + $0x204] sm:$0xf]
        %v682 = vld [vmem:[#allocation2 + $0x208] sm:$0xff]
        %v683 = vld [vmem:[#allocation2 + $0x210] sm:$0xff]
        %v684 = vld [vmem:[#allocation2 + $0x218] sm:$0xf]
        %v685 = vld [vmem:[#allocation2 + $0x21c] sm:$0xff]
        %v686 = vld [vmem:[#allocation2 + $0x224] sm:$0xff]
        %v687 = vld [vmem:[#allocation2 + $0x22c] sm:$0xf]
        %v688 = vld [vmem:[#allocation2 + $0x230] sm:$0xff]
        %v689 = vld [vmem:[#allocation2 + $0x238] sm:$0xff]
        %v690 = vld [vmem:[#allocation2 + $0x240] sm:$0xf]
        %v691 = vld [vmem:[#allocation2 + $0x244] sm:$0xff]
        %v692 = vld [vmem:[#allocation2 + $0x24c] sm:$0xff]
        %v693 = vld [vmem:[#allocation2 + $0x254] sm:$0xf]
        %v694 = vld [vmem:[#allocation2 + $0x258] sm:$0xff]
        %v695 = vld [vmem:[#allocation2 + $0x260] sm:$0xff]
        %v696 = vld [vmem:[#allocation2 + $0x268] sm:$0xf]
        %v697 = vld [vmem:[#allocation2 + $0x26c] sm:$0xff]
        %v698 = vld [vmem:[#allocation2 + $0x274] sm:$0xff]
        %v699 = vld [vmem:[#allocation2 + $0x27c] sm:$0xf]
        %v796 = vunpack.c.l.b16 %v604
        %v797 = vunpack.c.h.b16 %v604
        %v798 = vunpack.c.l.b16 %v605
        %v799 = vunpack.c.h.b16 %v605
        %v800 = vunpack.c.l.b16 %v606
        %v801 = vunpack.c.l.b16 %v607
        %v802 = vunpack.c.h.b16 %v607
        %v803 = vunpack.c.l.b16 %v608
        %v804 = vunpack.c.h.b16 %v608
        %v805 = vunpack.c.l.b16 %v609
        %v806 = vunpack.c.l.b16 %v610
        %v807 = vunpack.c.h.b16 %v610
        %v808 = vunpack.c.l.b16 %v611
        %v809 = vunpack.c.h.b16 %v611
        %v810 = vunpack.c.l.b16 %v612
        %v811 = vunpack.c.l.b16 %v613
        %v812 = vunpack.c.h.b16 %v613
        %v813 = vunpack.c.l.b16 %v614
        %v814 = vunpack.c.h.b16 %v614
        %v815 = vunpack.c.l.b16 %v615
        %v816 = vunpack.c.l.b16 %v616
        %v817 = vunpack.c.h.b16 %v616
        %v818 = vunpack.c.l.b16 %v617
        %v819 = vunpack.c.h.b16 %v617
        %v820 = vunpack.c.l.b16 %v618
        %v821 = vunpack.c.l.b16 %v619
        %v822 = vunpack.c.h.b16 %v619
        %v823 = vunpack.c.l.b16 %v620
        %v824 = vunpack.c.h.b16 %v620
        %v825 = vunpack.c.l.b16 %v621
        %v826 = vunpack.c.l.b16 %v622
        %v827 = vunpack.c.h.b16 %v622
        %v828 = vunpack.c.l.b16 %v623
        %v829 = vunpack.c.h.b16 %v623
        %v830 = vunpack.c.l.b16 %v624
        %v831 = vunpack.c.l.b16 %v625
        %v832 = vunpack.c.h.b16 %v625
        %v833 = vunpack.c.l.b16 %v626
        %v834 = vunpack.c.h.b16 %v626
        %v835 = vunpack.c.l.b16 %v627
        %v836 = vunpack.c.l.b16 %v628
        %v837 = vunpack.c.h.b16 %v628
        %v838 = vunpack.c.l.b16 %v629
        %v839 = vunpack.c.h.b16 %v629
        %v840 = vunpack.c.l.b16 %v630
        %v841 = vunpack.c.l.b16 %v631
        %v842 = vunpack.c.h.b16 %v631
        %v843 = vunpack.c.l.b16 %v632
        %v844 = vunpack.c.h.b16 %v632
        %v845 = vunpack.c.l.b16 %v633
        %v846 = vunpack.c.l.b16 %v634
        %v847 = vunpack.c.h.b16 %v634
        %v848 = vunpack.c.l.b16 %v635
        %v849 = vunpack.c.h.b16 %v635
        %v850 = vunpack.c.l.b16 %v636
        %v851 = vunpack.c.l.b16 %v637
        %v852 = vunpack.c.h.b16 %v637
        %v853 = vunpack.c.l.b16 %v638
        %v854 = vunpack.c.h.b16 %v638
        %v855 = vunpack.c.l.b16 %v639
        %v856 = vunpack.c.l.b16 %v640
        %v857 = vunpack.c.h.b16 %v640
        %v858 = vunpack.c.l.b16 %v641
        %v859 = vunpack.c.h.b16 %v641
        %v860 = vunpack.c.l.b16 %v642
        %v861 = vunpack.c.l.b16 %v643
        %v862 = vunpack.c.h.b16 %v643
        %v863 = vunpack.c.l.b16 %v644
        %v864 = vunpack.c.h.b16 %v644
        %v865 = vunpack.c.l.b16 %v645
        %v866 = vunpack.c.l.b16 %v646
        %v867 = vunpack.c.h.b16 %v646
        %v868 = vunpack.c.l.b16 %v647
        %v869 = vunpack.c.h.b16 %v647
        %v870 = vunpack.c.l.b16 %v648
        %v871 = vunpack.c.l.b16 %v649
        %v872 = vunpack.c.h.b16 %v649
        %v873 = vunpack.c.l.b16 %v650
        %v874 = vunpack.c.h.b16 %v650
        %v875 = vunpack.c.l.b16 %v651
        %v876 = vunpack.c.l.b16 %v652
        %v877 = vunpack.c.h.b16 %v652
        %v878 = vunpack.c.l.b16 %v653
        %v879 = vunpack.c.h.b16 %v653
        %v880 = vunpack.c.l.b16 %v654
        %v881 = vunpack.c.l.b16 %v655
        %v882 = vunpack.c.h.b16 %v655
        %v883 = vunpack.c.l.b16 %v656
        %v884 = vunpack.c.h.b16 %v656
        %v885 = vunpack.c.l.b16 %v657
        %v886 = vunpack.c.l.b16 %v658
        %v887 = vunpack.c.h.b16 %v658
        %v888 = vunpack.c.l.b16 %v659
        %v889 = vunpack.c.h.b16 %v659
        %v890 = vunpack.c.l.b16 %v660
        %v891 = vunpack.c.l.b16 %v661
        %v892 = vunpack.c.h.b16 %v661
        %v893 = vunpack.c.l.b16 %v662
        %v894 = vunpack.c.h.b16 %v662
        %v895 = vunpack.c.l.b16 %v663
        %v896 = vunpack.c.l.b16 %v664
        %v897 = vunpack.c.h.b16 %v664
        %v898 = vunpack.c.l.b16 %v665
        %v899 = vunpack.c.h.b16 %v665
        %v900 = vunpack.c.l.b16 %v666
        %v901 = vunpack.c.l.b16 %v667
        %v902 = vunpack.c.h.b16 %v667
        %v903 = vunpack.c.l.b16 %v668
        %v904 = vunpack.c.h.b16 %v668
        %v905 = vunpack.c.l.b16 %v669
        %v906 = vunpack.c.l.b16 %v670
        %v907 = vunpack.c.h.b16 %v670
        %v908 = vunpack.c.l.b16 %v671
        %v909 = vunpack.c.h.b16 %v671
        %v910 = vunpack.c.l.b16 %v672
        %v911 = vunpack.c.l.b16 %v673
        %v912 = vunpack.c.h.b16 %v673
        %v913 = vunpack.c.l.b16 %v674
        %v914 = vunpack.c.h.b16 %v674
        %v915 = vunpack.c.l.b16 %v675
        %v916 = vunpack.c.l.b16 %v676
        %v917 = vunpack.c.h.b16 %v676
        %v918 = vunpack.c.l.b16 %v677
        %v919 = vunpack.c.h.b16 %v677
        %v920 = vunpack.c.l.b16 %v678
        %v921 = vunpack.c.l.b16 %v679
        %v922 = vunpack.c.h.b16 %v679
        %v923 = vunpack.c.l.b16 %v680
        %v924 = vunpack.c.h.b16 %v680
        %v925 = vunpack.c.l.b16 %v681
        %v926 = vunpack.c.l.b16 %v682
        %v927 = vunpack.c.h.b16 %v682
        %v928 = vunpack.c.l.b16 %v683
        %v929 = vunpack.c.h.b16 %v683
        %v930 = vunpack.c.l.b16 %v684
        %v931 = vunpack.c.l.b16 %v685
        %v932 = vunpack.c.h.b16 %v685
        %v933 = vunpack.c.l.b16 %v686
        %v934 = vunpack.c.h.b16 %v686
        %v935 = vunpack.c.l.b16 %v687
        %v936 = vunpack.c.l.b16 %v688
        %v937 = vunpack.c.h.b16 %v688
        %v938 = vunpack.c.l.b16 %v689
        %v939 = vunpack.c.h.b16 %v689
        %v940 = vunpack.c.l.b16 %v690
        %v941 = vunpack.c.l.b16 %v691
        %v942 = vunpack.c.h.b16 %v691
        %v943 = vunpack.c.l.b16 %v692
        %v944 = vunpack.c.h.b16 %v692
        %v945 = vunpack.c.l.b16 %v693
        %v946 = vunpack.c.l.b16 %v694
        %v947 = vunpack.c.h.b16 %v694
        %v948 = vunpack.c.l.b16 %v695
        %v949 = vunpack.c.h.b16 %v695
        %v950 = vunpack.c.l.b16 %v696
        %v951 = vunpack.c.l.b16 %v697
        %v952 = vunpack.c.h.b16 %v697
        %v953 = vunpack.c.l.b16 %v698
        %v954 = vunpack.c.h.b16 %v698
        %v955 = vunpack.c.l.b16 %v699
        %v956 = vpack.c.b16 %v801, %v796
        %v957 = vpack.c.b16 %v802, %v797
        %v958 = vpack.c.b16 %v803, %v798
        %v959 = vpack.c.b16 %v804, %v799
        %v960 = vpack.c.b16 %v805, %v800
        %v961 = vpack.c.b16 %v811, %v806
        %v962 = vpack.c.b16 %v812, %v807
        %v963 = vpack.c.b16 %v813, %v808
        %v964 = vpack.c.b16 %v814, %v809
        %v965 = vpack.c.b16 %v815, %v810
        %v966 = vpack.c.b16 %v821, %v816
        %v967 = vpack.c.b16 %v822, %v817
        %v968 = vpack.c.b16 %v823, %v818
        %v969 = vpack.c.b16 %v824, %v819
        %v970 = vpack.c.b16 %v825, %v820
        %v971 = vpack.c.b16 %v831, %v826
        %v972 = vpack.c.b16 %v832, %v827
        %v973 = vpack.c.b16 %v833, %v828
        %v974 = vpack.c.b16 %v834, %v829
        %v975 = vpack.c.b16 %v835, %v830
        %v976 = vpack.c.b16 %v841, %v836
        %v977 = vpack.c.b16 %v842, %v837
        %v978 = vpack.c.b16 %v843, %v838
        %v979 = vpack.c.b16 %v844, %v839
        %v980 = vpack.c.b16 %v845, %v840
        %v981 = vpack.c.b16 %v851, %v846
        %v982 = vpack.c.b16 %v852, %v847
        %v983 = vpack.c.b16 %v853, %v848
        %v984 = vpack.c.b16 %v854, %v849
        %v985 = vpack.c.b16 %v855, %v850
        %v986 = vpack.c.b16 %v861, %v856
        %v987 = vpack.c.b16 %v862, %v857
        %v988 = vpack.c.b16 %v863, %v858
        %v989 = vpack.c.b16 %v864, %v859
        %v990 = vpack.c.b16 %v865, %v860
        %v991 = vpack.c.b16 %v871, %v866
        %v992 = vpack.c.b16 %v872, %v867
        %v993 = vpack.c.b16 %v873, %v868
        %v994 = vpack.c.b16 %v874, %v869
        %v995 = vpack.c.b16 %v875, %v870
        %v996 = vpack.c.b16 %v881, %v876
        %v997 = vpack.c.b16 %v882, %v877
        %v998 = vpack.c.b16 %v883, %v878
        %v999 = vpack.c.b16 %v884, %v879
        %v1000 = vpack.c.b16 %v885, %v880
        %v1001 = vpack.c.b16 %v891, %v886
        %v1002 = vpack.c.b16 %v892, %v887
        %v1003 = vpack.c.b16 %v893, %v888
        %v1004 = vpack.c.b16 %v894, %v889
        %v1005 = vpack.c.b16 %v895, %v890
        %v1006 = vpack.c.b16 %v901, %v896
        %v1007 = vpack.c.b16 %v902, %v897
        %v1008 = vpack.c.b16 %v903, %v898
        %v1009 = vpack.c.b16 %v904, %v899
        %v1010 = vpack.c.b16 %v905, %v900
        %v1011 = vpack.c.b16 %v911, %v906
        %v1012 = vpack.c.b16 %v912, %v907
        %v1013 = vpack.c.b16 %v913, %v908
        %v1014 = vpack.c.b16 %v914, %v909
        %v1015 = vpack.c.b16 %v915, %v910
        %v1016 = vpack.c.b16 %v921, %v916
        %v1017 = vpack.c.b16 %v922, %v917
        %v1018 = vpack.c.b16 %v923, %v918
        %v1019 = vpack.c.b16 %v924, %v919
        %v1020 = vpack.c.b16 %v925, %v920
        %v1021 = vpack.c.b16 %v931, %v926
        %v1022 = vpack.c.b16 %v932, %v927
        %v1023 = vpack.c.b16 %v933, %v928
        %v1024 = vpack.c.b16 %v934, %v929
        %v1025 = vpack.c.b16 %v935, %v930
        %v1026 = vpack.c.b16 %v941, %v936
        %v1027 = vpack.c.b16 %v942, %v937
        %v1028 = vpack.c.b16 %v943, %v938
        %v1029 = vpack.c.b16 %v944, %v939
        %v1030 = vpack.c.b16 %v945, %v940
        %v1031 = vpack.c.b16 %v951, %v946
        %v1032 = vpack.c.b16 %v952, %v947
        %v1033 = vpack.c.b16 %v953, %v948
        %v1034 = vpack.c.b16 %v954, %v949
        %v1035 = vpack.c.b16 %v955, %v950
        %1116 = vmatpush.bf16.msra.mxu0 %v991
        %1117 = vmatpush.bf16.msra.mxu0 %v986
        %1118 = vmatpush.bf16.msra.mxu0 %v981
        %1119 = vmatpush.bf16.msra.mxu0 %v976
        %1120 = vmatpush.bf16.msra.mxu0 %v971
        %1121 = vmatpush.bf16.msra.mxu0 %v966
        %1122 = vmatpush.bf16.msra.mxu0 %v961
        %1123 = vmatpush.bf16.msra.mxu0 %v956
        %1124 = vmatmul.bf16.gmra.mxu0 %v602
        %v1125 = vpop.f32.mrf.mxu0
        %v1126 = vadd.f32 0.0, %v1125
        %v1127 = vpop.f32.mrf.mxu0
        %1128 = vdwg.mxu0
        %1129 = vmatpush.bf16.msra.mxu0 %v1031
        %1130 = vmatpush.bf16.msra.mxu0 %v1026
        %1131 = vmatpush.bf16.msra.mxu0 %v1021
        %1132 = vmatpush.bf16.msra.mxu0 %v1016
        %1133 = vmatpush.bf16.msra.mxu0 %v1011
        %1134 = vmatpush.bf16.msra.mxu0 %v1006
        %1135 = vmatpush.bf16.msra.mxu0 %v1001
        %1136 = vmatpush.bf16.msra.mxu0 %v996
        %1137 = vmatmul.bf16.gmra.mxu0 %v603
        %v1138 = vpop.f32.mrf.mxu0
        %v1139 = vadd.f32 %v1126, %v1138
        %v1140 = vpop.f32.mrf.mxu0
        %1141 = vdwg.mxu0
        %1142 = vmatpush.bf16.msra.mxu0 %v992
        %1143 = vmatpush.bf16.msra.mxu0 %v987
        %1144 = vmatpush.bf16.msra.mxu0 %v982
        %1145 = vmatpush.bf16.msra.mxu0 %v977
        %1146 = vmatpush.bf16.msra.mxu0 %v972
        %1147 = vmatpush.bf16.msra.mxu0 %v967
        %1148 = vmatpush.bf16.msra.mxu0 %v962
        %1149 = vmatpush.bf16.msra.mxu0 %v957
        %1150 = vmatmul.bf16.gmra.mxu0 %v602
        %v1151 = vpop.f32.mrf.mxu0
        %v1152 = vadd.f32 0.0, %v1151
        %v1153 = vpop.f32.mrf.mxu0
        %1154 = vdwg.mxu0
        %1155 = vmatpush.bf16.msra.mxu0 %v1032
        %1156 = vmatpush.bf16.msra.mxu0 %v1027
        %1157 = vmatpush.bf16.msra.mxu0 %v1022
        %1158 = vmatpush.bf16.msra.mxu0 %v1017
        %1159 = vmatpush.bf16.msra.mxu0 %v1012
        %1160 = vmatpush.bf16.msra.mxu0 %v1007
        %1161 = vmatpush.bf16.msra.mxu0 %v1002
        %1162 = vmatpush.bf16.msra.mxu0 %v997
        %1163 = vmatmul.bf16.gmra.mxu0 %v603
        %v1164 = vpop.f32.mrf.mxu0
        %v1165 = vadd.f32 %v1152, %v1164
        %v1166 = vpop.f32.mrf.mxu0
        %1167 = vdwg.mxu0
        %1168 = vmatpush.bf16.msra.mxu0 %v993
        %1169 = vmatpush.bf16.msra.mxu0 %v988
        %1170 = vmatpush.bf16.msra.mxu0 %v983
        %1171 = vmatpush.bf16.msra.mxu0 %v978
        %1172 = vmatpush.bf16.msra.mxu0 %v973
        %1173 = vmatpush.bf16.msra.mxu0 %v968
        %1174 = vmatpush.bf16.msra.mxu0 %v963
        %1175 = vmatpush.bf16.msra.mxu0 %v958
        %1176 = vmatmul.bf16.gmra.mxu0 %v602
        %v1177 = vpop.f32.mrf.mxu0
        %v1178 = vadd.f32 0.0, %v1177
        %v1179 = vpop.f32.mrf.mxu0
        %1180 = vdwg.mxu0
        %1181 = vmatpush.bf16.msra.mxu0 %v1033
        %1182 = vmatpush.bf16.msra.mxu0 %v1028
        %1183 = vmatpush.bf16.msra.mxu0 %v1023
        %1184 = vmatpush.bf16.msra.mxu0 %v1018
        %1185 = vmatpush.bf16.msra.mxu0 %v1013
        %1186 = vmatpush.bf16.msra.mxu0 %v1008
        %1187 = vmatpush.bf16.msra.mxu0 %v1003
        %1188 = vmatpush.bf16.msra.mxu0 %v998
        %1189 = vmatmul.bf16.gmra.mxu0 %v603
        %v1190 = vpop.f32.mrf.mxu0
        %v1191 = vadd.f32 %v1178, %v1190
        %v1192 = vpop.f32.mrf.mxu0
        %1193 = vdwg.mxu0
        %1194 = vmatpush.bf16.msra.mxu0 %v994
        %1195 = vmatpush.bf16.msra.mxu0 %v989
        %1196 = vmatpush.bf16.msra.mxu0 %v984
        %1197 = vmatpush.bf16.msra.mxu0 %v979
        %1198 = vmatpush.bf16.msra.mxu0 %v974
        %1199 = vmatpush.bf16.msra.mxu0 %v969
        %1200 = vmatpush.bf16.msra.mxu0 %v964
        %1201 = vmatpush.bf16.msra.mxu0 %v959
        %1202 = vmatmul.bf16.gmra.mxu0 %v602
        %v1203 = vpop.f32.mrf.mxu0
        %v1204 = vadd.f32 0.0, %v1203
        %v1205 = vpop.f32.mrf.mxu0
        %1206 = vdwg.mxu0
        %1207 = vmatpush.bf16.msra.mxu0 %v1034
        %1208 = vmatpush.bf16.msra.mxu0 %v1029
        %1209 = vmatpush.bf16.msra.mxu0 %v1024
        %1210 = vmatpush.bf16.msra.mxu0 %v1019
        %1211 = vmatpush.bf16.msra.mxu0 %v1014
        %1212 = vmatpush.bf16.msra.mxu0 %v1009
        %1213 = vmatpush.bf16.msra.mxu0 %v1004
        %1214 = vmatpush.bf16.msra.mxu0 %v999
        %1215 = vmatmul.bf16.gmra.mxu0 %v603
        %v1216 = vpop.f32.mrf.mxu0
        %v1217 = vadd.f32 %v1204, %v1216
        %v1218 = vpop.f32.mrf.mxu0
        %1219 = vdwg.mxu0
        %1220 = vmatpush.bf16.msra.mxu0 %v995
        %1221 = vmatpush.bf16.msra.mxu0 %v990
        %1222 = vmatpush.bf16.msra.mxu0 %v985
        %1223 = vmatpush.bf16.msra.mxu0 %v980
        %1224 = vmatpush.bf16.msra.mxu0 %v975
        %1225 = vmatpush.bf16.msra.mxu0 %v970
        %1226 = vmatpush.bf16.msra.mxu0 %v965
        %1227 = vmatpush.bf16.msra.mxu0 %v960
        %1228 = vmatmul.bf16.gmra.mxu0 %v602
        %v1229 = vpop.f32.mrf.mxu0
        %v1230 = vadd.f32 0.0, %v1229
        %v1231 = vpop.f32.mrf.mxu0
        %1232 = vdwg.mxu0
        %1233 = vmatpush.bf16.msra.mxu0 %v1035
        %1234 = vmatpush.bf16.msra.mxu0 %v1030
        %1235 = vmatpush.bf16.msra.mxu0 %v1025
        %1236 = vmatpush.bf16.msra.mxu0 %v1020
        %1237 = vmatpush.bf16.msra.mxu0 %v1015
        %1238 = vmatpush.bf16.msra.mxu0 %v1010
        %1239 = vmatpush.bf16.msra.mxu0 %v1005
        %1240 = vmatpush.bf16.msra.mxu0 %v1000
        %1241 = vmatmul.bf16.gmra.mxu0 %v603
        %v1242 = vpop.f32.mrf.mxu0
        %v1243 = vadd.f32 %v1230, %v1242
        %v1244 = vpop.f32.mrf.mxu0
        %1245 = vdwg.mxu0
        %v1246 = vld [vmem:[%s532] sm:$0x3f]
        %v1247 = vld [vmem:[%s532 + $0x8] sm:$0x3f]
        %v1248 = vld [vmem:[%s532 + $0x10] sm:$0x3f]
        %v1249 = vld [vmem:[%s532 + $0x18] sm:$0x3f]
        %v1250 = vld [vmem:[%s532 + $0x20] sm:$0x3f]
        %v1251 = vpack.c.bf16 %v1246, %v1246
        %v1252 = vpack.c.bf16 %v1247, %v1247
        %v1253 = vpack.c.bf16 %v1248, %v1248
        %v1254 = vpack.c.bf16 %v1249, %v1249
        %v1255 = vpack.c.bf16 %v1250, %v1250
        %v1256 = vld [vmem:[%s4] sm:$0x7]
        %v1257 = vpack.c.bf16 %v1139, %v1139
        %v1258 = vpack.c.bf16 %v1165, %v1165
        %v1259 = vpack.c.bf16 %v1191, %v1191
        %v1260 = vpack.c.bf16 %v1217, %v1217
        %v1261 = vpack.c.bf16 %v1243, %v1243
        %v1262 = vld [vmem:[%s5] sm:$0x7]
        %v1264 = vsel %vm563, %v1262, 0
        %v1267 = vsel %vm567, %v1251, 0
        %v1270 = vsel %vm567, %v1252, 0
        %v1273 = vsel %vm567, %v1253, 0
        %v1276 = vsel %vm567, %v1254, 0
        %v1279 = vsel %vm567, %v1255, 0
        %1281 = vmatpush.bf16.msra.mxu0 0
        %1282 = vmatpush.bf16.msra.mxu0 0
        %1283 = vmatpush.bf16.msra.mxu0 0
        %1284 = vmatpush.bf16.msra.mxu0 0
        %1285 = vmatpush.bf16.msra.mxu0 0
        %1286 = vmatpush.bf16.msra.mxu0 0
        %1287 = vmatpush.bf16.msra.mxu0 0
        %1288 = vmatpush.bf16.msra.mxu0 %v1267
        %1289 = vmatmul.bf16.gmra.mxu0 %v1264
        %v1290 = vpop.f32.mrf.mxu0
        %v1291 = vadd.f32 0.0, %v1290
        %v1292 = vpop.f32.mrf.mxu0
        %1293 = vdwg.mxu0
        %1294 = vmatpush.bf16.msra.mxu0 0
        %1295 = vmatpush.bf16.msra.mxu0 0
        %1296 = vmatpush.bf16.msra.mxu0 0
        %1297 = vmatpush.bf16.msra.mxu0 0
        %1298 = vmatpush.bf16.msra.mxu0 0
        %1299 = vmatpush.bf16.msra.mxu0 0
        %1300 = vmatpush.bf16.msra.mxu0 0
        %1301 = vmatpush.bf16.msra.mxu0 %v1270
        %1302 = vmatmul.bf16.gmra.mxu0 %v1264
        %v1303 = vpop.f32.mrf.mxu0
        %v1304 = vadd.f32 0.0, %v1303
        %v1305 = vpop.f32.mrf.mxu0
        %1306 = vdwg.mxu0
        %1307 = vmatpush.bf16.msra.mxu0 0
        %1308 = vmatpush.bf16.msra.mxu0 0
        %1309 = vmatpush.bf16.msra.mxu0 0
        %1310 = vmatpush.bf16.msra.mxu0 0
        %1311 = vmatpush.bf16.msra.mxu0 0
        %1312 = vmatpush.bf16.msra.mxu0 0
        %1313 = vmatpush.bf16.msra.mxu0 0
        %1314 = vmatpush.bf16.msra.mxu0 %v1273
        %1315 = vmatmul.bf16.gmra.mxu0 %v1264
        %v1316 = vpop.f32.mrf.mxu0
        %v1317 = vadd.f32 0.0, %v1316
        %v1318 = vpop.f32.mrf.mxu0
        %1319 = vdwg.mxu0
        %1320 = vmatpush.bf16.msra.mxu0 0
        %1321 = vmatpush.bf16.msra.mxu0 0
        %1322 = vmatpush.bf16.msra.mxu0 0
        %1323 = vmatpush.bf16.msra.mxu0 0
        %1324 = vmatpush.bf16.msra.mxu0 0
        %1325 = vmatpush.bf16.msra.mxu0 0
        %1326 = vmatpush.bf16.msra.mxu0 0
        %1327 = vmatpush.bf16.msra.mxu0 %v1276
        %1328 = vmatmul.bf16.gmra.mxu0 %v1264
        %v1329 = vpop.f32.mrf.mxu0
        %v1330 = vadd.f32 0.0, %v1329
        %v1331 = vpop.f32.mrf.mxu0
        %1332 = vdwg.mxu0
        %1333 = vmatpush.bf16.msra.mxu0 0
        %1334 = vmatpush.bf16.msra.mxu0 0
        %1335 = vmatpush.bf16.msra.mxu0 0
        %1336 = vmatpush.bf16.msra.mxu0 0
        %1337 = vmatpush.bf16.msra.mxu0 0
        %1338 = vmatpush.bf16.msra.mxu0 0
        %1339 = vmatpush.bf16.msra.mxu0 0
        %1340 = vmatpush.bf16.msra.mxu0 %v1279
        %1341 = vmatmul.bf16.gmra.mxu0 %v1264
        %v1342 = vpop.f32.mrf.mxu0
        %v1343 = vadd.f32 0.0, %v1342
        %v1344 = vpop.f32.mrf.mxu0
        %1345 = vdwg.mxu0
        %v1347 = vsel %vm563, %v1256, 0
        %v1350 = vsel %vm567, %v1257, 0
        %v1353 = vsel %vm567, %v1258, 0
        %v1356 = vsel %vm567, %v1259, 0
        %v1359 = vsel %vm567, %v1260, 0
        %v1362 = vsel %vm567, %v1261, 0
        %1364 = vmatpush.bf16.msra.mxu0 0
        %1365 = vmatpush.bf16.msra.mxu0 0
        %1366 = vmatpush.bf16.msra.mxu0 0
        %1367 = vmatpush.bf16.msra.mxu0 0
        %1368 = vmatpush.bf16.msra.mxu0 0
        %1369 = vmatpush.bf16.msra.mxu0 0
        %1370 = vmatpush.bf16.msra.mxu0 0
        %1371 = vmatpush.bf16.msra.mxu0 %v1350
        %1372 = vmatmul.bf16.gmra.mxu0 %v1347
        %v1373 = vpop.f32.mrf.mxu0
        %v1374 = vadd.f32 %v1291, %v1373
        %v1375 = vpop.f32.mrf.mxu0
        %1376 = vdwg.mxu0
        %1377 = vmatpush.bf16.msra.mxu0 0
        %1378 = vmatpush.bf16.msra.mxu0 0
        %1379 = vmatpush.bf16.msra.mxu0 0
        %1380 = vmatpush.bf16.msra.mxu0 0
        %1381 = vmatpush.bf16.msra.mxu0 0
        %1382 = vmatpush.bf16.msra.mxu0 0
        %1383 = vmatpush.bf16.msra.mxu0 0
        %1384 = vmatpush.bf16.msra.mxu0 %v1353
        %1385 = vmatmul.bf16.gmra.mxu0 %v1347
        %v1386 = vpop.f32.mrf.mxu0
        %v1387 = vadd.f32 %v1304, %v1386
        %v1388 = vpop.f32.mrf.mxu0
        %1389 = vdwg.mxu0
        %1390 = vmatpush.bf16.msra.mxu0 0
        %1391 = vmatpush.bf16.msra.mxu0 0
        %1392 = vmatpush.bf16.msra.mxu0 0
        %1393 = vmatpush.bf16.msra.mxu0 0
        %1394 = vmatpush.bf16.msra.mxu0 0
        %1395 = vmatpush.bf16.msra.mxu0 0
        %1396 = vmatpush.bf16.msra.mxu0 0
        %1397 = vmatpush.bf16.msra.mxu0 %v1356
        %1398 = vmatmul.bf16.gmra.mxu0 %v1347
        %v1399 = vpop.f32.mrf.mxu0
        %v1400 = vadd.f32 %v1317, %v1399
        %v1401 = vpop.f32.mrf.mxu0
        %1402 = vdwg.mxu0
        %1403 = vmatpush.bf16.msra.mxu0 0
        %1404 = vmatpush.bf16.msra.mxu0 0
        %1405 = vmatpush.bf16.msra.mxu0 0
        %1406 = vmatpush.bf16.msra.mxu0 0
        %1407 = vmatpush.bf16.msra.mxu0 0
        %1408 = vmatpush.bf16.msra.mxu0 0
        %1409 = vmatpush.bf16.msra.mxu0 0
        %1410 = vmatpush.bf16.msra.mxu0 %v1359
        %1411 = vmatmul.bf16.gmra.mxu0 %v1347
        %v1412 = vpop.f32.mrf.mxu0
        %v1413 = vadd.f32 %v1330, %v1412
        %v1414 = vpop.f32.mrf.mxu0
        %1415 = vdwg.mxu0
        %1416 = vmatpush.bf16.msra.mxu0 0
        %1417 = vmatpush.bf16.msra.mxu0 0
        %1418 = vmatpush.bf16.msra.mxu0 0
        %1419 = vmatpush.bf16.msra.mxu0 0
        %1420 = vmatpush.bf16.msra.mxu0 0
        %1421 = vmatpush.bf16.msra.mxu0 0
        %1422 = vmatpush.bf16.msra.mxu0 0
        %1423 = vmatpush.bf16.msra.mxu0 %v1362
        %1424 = vmatmul.bf16.gmra.mxu0 %v1347
        %v1425 = vpop.f32.mrf.mxu0
        %v1426 = vadd.f32 %v1343, %v1425
        %v1427 = vpop.f32.mrf.mxu0
        %1428 = vdwg.mxu0
        %v1429 = vld [vmem:[%s10] sm:$0x3f]
        %1431 = vset.pattern.permute.xlu0 0
        %1432 = vperm.xlu0 %1431, %v1429
        %v1433 = vpop.permute.xlu0 %1432
        %v1435 = vadd.f32 %v1374, %v1433
        %v1436 = vadd.f32 %v1387, %v1433
        %v1437 = vadd.f32 %v1400, %v1433
        %v1438 = vadd.f32 %v1413, %v1433
        %v1439 = vadd.f32 %v1426, %v1433
        %v1440 = vld [vmem:[%s6] sm:$0x7]
        %v1441 = vpack.c.bf16 %v1435, %v1435
        %v1442 = vpack.c.bf16 %v1436, %v1436
        %v1443 = vpack.c.bf16 %v1437, %v1437
        %v1444 = vpack.c.bf16 %v1438, %v1438
        %v1445 = vpack.c.bf16 %v1439, %v1439
        %v1446 = vld [vmem:[%s11] sm:$0x3f]
        %1448 = vset.pattern.permute.xlu0 0
        %1449 = vperm.xlu0 %1448, %v1446
        %v1450 = vpop.permute.xlu0 %1449
        %v1453 = vsel %vm563, %v1440, 0
        %v1456 = vsel %vm567, %v1441, 0
        %v1459 = vsel %vm567, %v1442, 0
        %v1462 = vsel %vm567, %v1443, 0
        %v1465 = vsel %vm567, %v1444, 0
        %v1468 = vsel %vm567, %v1445, 0
        %1470 = vmatpush.bf16.msra.mxu0 0
        %1471 = vmatpush.bf16.msra.mxu0 0
        %1472 = vmatpush.bf16.msra.mxu0 0
        %1473 = vmatpush.bf16.msra.mxu0 0
        %1474 = vmatpush.bf16.msra.mxu0 0
        %1475 = vmatpush.bf16.msra.mxu0 0
        %1476 = vmatpush.bf16.msra.mxu0 0
        %1477 = vmatpush.bf16.msra.mxu0 %v1456
        %1478 = vmatmul.bf16.gmra.mxu0 %v1453
        %v1479 = vpop.f32.mrf.mxu0
        %v1480 = vadd.f32 %v1450, %v1479
        %v1481 = vpop.f32.mrf.mxu0
        %1482 = vdwg.mxu0
        %1483 = vmatpush.bf16.msra.mxu0 0
        %1484 = vmatpush.bf16.msra.mxu0 0
        %1485 = vmatpush.bf16.msra.mxu0 0
        %1486 = vmatpush.bf16.msra.mxu0 0
        %1487 = vmatpush.bf16.msra.mxu0 0
        %1488 = vmatpush.bf16.msra.mxu0 0
        %1489 = vmatpush.bf16.msra.mxu0 0
        %1490 = vmatpush.bf16.msra.mxu0 %v1459
        %1491 = vmatmul.bf16.gmra.mxu0 %v1453
        %v1492 = vpop.f32.mrf.mxu0
        %v1493 = vadd.f32 %v1450, %v1492
        %v1494 = vpop.f32.mrf.mxu0
        %1495 = vdwg.mxu0
        %1496 = vmatpush.bf16.msra.mxu0 0
        %1497 = vmatpush.bf16.msra.mxu0 0
        %1498 = vmatpush.bf16.msra.mxu0 0
        %1499 = vmatpush.bf16.msra.mxu0 0
        %1500 = vmatpush.bf16.msra.mxu0 0
        %1501 = vmatpush.bf16.msra.mxu0 0
        %1502 = vmatpush.bf16.msra.mxu0 0
        %1503 = vmatpush.bf16.msra.mxu0 %v1462
        %1504 = vmatmul.bf16.gmra.mxu0 %v1453
        %v1505 = vpop.f32.mrf.mxu0
        %v1506 = vadd.f32 %v1450, %v1505
        %v1507 = vpop.f32.mrf.mxu0
        %1508 = vdwg.mxu0
        %1509 = vmatpush.bf16.msra.mxu0 0
        %1510 = vmatpush.bf16.msra.mxu0 0
        %1511 = vmatpush.bf16.msra.mxu0 0
        %1512 = vmatpush.bf16.msra.mxu0 0
        %1513 = vmatpush.bf16.msra.mxu0 0
        %1514 = vmatpush.bf16.msra.mxu0 0
        %1515 = vmatpush.bf16.msra.mxu0 0
        %1516 = vmatpush.bf16.msra.mxu0 %v1465
        %1517 = vmatmul.bf16.gmra.mxu0 %v1453
        %v1518 = vpop.f32.mrf.mxu0
        %v1519 = vadd.f32 %v1450, %v1518
        %v1520 = vpop.f32.mrf.mxu0
        %1521 = vdwg.mxu0
        %1522 = vmatpush.bf16.msra.mxu0 0
        %1523 = vmatpush.bf16.msra.mxu0 0
        %1524 = vmatpush.bf16.msra.mxu0 0
        %1525 = vmatpush.bf16.msra.mxu0 0
        %1526 = vmatpush.bf16.msra.mxu0 0
        %1527 = vmatpush.bf16.msra.mxu0 0
        %1528 = vmatpush.bf16.msra.mxu0 0
        %1529 = vmatpush.bf16.msra.mxu0 %v1468
        %1530 = vmatmul.bf16.gmra.mxu0 %v1453
        %v1531 = vpop.f32.mrf.mxu0
        %v1532 = vadd.f32 %v1450, %v1531
        %v1533 = vpop.f32.mrf.mxu0
        %1534 = vdwg.mxu0
        %v1535 = vmax.f32 %v1480, 0.0
        %v1536 = vmax.f32 %v1493, 0.0
        %v1537 = vmax.f32 %v1506, 0.0
        %v1538 = vmax.f32 %v1519, 0.0
        %v1539 = vmax.f32 %v1532, 0.0
        %v1540 = vld [vmem:[%s7] sm:$0x7]
        %v1541 = vpack.c.bf16 %v1535, %v1535
        %v1542 = vpack.c.bf16 %v1536, %v1536
        %v1543 = vpack.c.bf16 %v1537, %v1537
        %v1544 = vpack.c.bf16 %v1538, %v1538
        %v1545 = vpack.c.bf16 %v1539, %v1539
        %v1546 = vld [vmem:[%s12] sm:$0x3f]
        %1548 = vset.pattern.permute.xlu0 0
        %1549 = vperm.xlu0 %1548, %v1546
        %v1550 = vpop.permute.xlu0 %1549
        %v1553 = vsel %vm563, %v1540, 0
        %v1556 = vsel %vm567, %v1541, 0
        %v1559 = vsel %vm567, %v1542, 0
        %v1562 = vsel %vm567, %v1543, 0
        %v1565 = vsel %vm567, %v1544, 0
        %v1568 = vsel %vm567, %v1545, 0
        %1570 = vmatpush.bf16.msra.mxu0 0
        %1571 = vmatpush.bf16.msra.mxu0 0
        %1572 = vmatpush.bf16.msra.mxu0 0
        %1573 = vmatpush.bf16.msra.mxu0 0
        %1574 = vmatpush.bf16.msra.mxu0 0
        %1575 = vmatpush.bf16.msra.mxu0 0
        %1576 = vmatpush.bf16.msra.mxu0 0
        %1577 = vmatpush.bf16.msra.mxu0 %v1556
        %1578 = vmatmul.bf16.gmra.mxu0 %v1553
        %v1579 = vpop.f32.mrf.mxu0
        %v1580 = vadd.f32 %v1550, %v1579
        %v1581 = vpop.f32.mrf.mxu0
        %1582 = vdwg.mxu0
        %1583 = vmatpush.bf16.msra.mxu0 0
        %1584 = vmatpush.bf16.msra.mxu0 0
        %1585 = vmatpush.bf16.msra.mxu0 0
        %1586 = vmatpush.bf16.msra.mxu0 0
        %1587 = vmatpush.bf16.msra.mxu0 0
        %1588 = vmatpush.bf16.msra.mxu0 0
        %1589 = vmatpush.bf16.msra.mxu0 0
        %1590 = vmatpush.bf16.msra.mxu0 %v1559
        %1591 = vmatmul.bf16.gmra.mxu0 %v1553
        %v1592 = vpop.f32.mrf.mxu0
        %v1593 = vadd.f32 %v1550, %v1592
        %v1594 = vpop.f32.mrf.mxu0
        %1595 = vdwg.mxu0
        %1596 = vmatpush.bf16.msra.mxu0 0
        %1597 = vmatpush.bf16.msra.mxu0 0
        %1598 = vmatpush.bf16.msra.mxu0 0
        %1599 = vmatpush.bf16.msra.mxu0 0
        %1600 = vmatpush.bf16.msra.mxu0 0
        %1601 = vmatpush.bf16.msra.mxu0 0
        %1602 = vmatpush.bf16.msra.mxu0 0
        %1603 = vmatpush.bf16.msra.mxu0 %v1562
        %1604 = vmatmul.bf16.gmra.mxu0 %v1553
        %v1605 = vpop.f32.mrf.mxu0
        %v1606 = vadd.f32 %v1550, %v1605
        %v1607 = vpop.f32.mrf.mxu0
        %1608 = vdwg.mxu0
        %1609 = vmatpush.bf16.msra.mxu0 0
        %1610 = vmatpush.bf16.msra.mxu0 0
        %1611 = vmatpush.bf16.msra.mxu0 0
        %1612 = vmatpush.bf16.msra.mxu0 0
        %1613 = vmatpush.bf16.msra.mxu0 0
        %1614 = vmatpush.bf16.msra.mxu0 0
        %1615 = vmatpush.bf16.msra.mxu0 0
        %1616 = vmatpush.bf16.msra.mxu0 %v1565
        %1617 = vmatmul.bf16.gmra.mxu0 %v1553
        %v1618 = vpop.f32.mrf.mxu0
        %v1619 = vadd.f32 %v1550, %v1618
        %v1620 = vpop.f32.mrf.mxu0
        %1621 = vdwg.mxu0
        %1622 = vmatpush.bf16.msra.mxu0 0
        %1623 = vmatpush.bf16.msra.mxu0 0
        %1624 = vmatpush.bf16.msra.mxu0 0
        %1625 = vmatpush.bf16.msra.mxu0 0
        %1626 = vmatpush.bf16.msra.mxu0 0
        %1627 = vmatpush.bf16.msra.mxu0 0
        %1628 = vmatpush.bf16.msra.mxu0 0
        %1629 = vmatpush.bf16.msra.mxu0 %v1568
        %1630 = vmatmul.bf16.gmra.mxu0 %v1553
        %v1631 = vpop.f32.mrf.mxu0
        %v1632 = vadd.f32 %v1550, %v1631
        %v1633 = vpop.f32.mrf.mxu0
        %1634 = vdwg.mxu0
        %v1635 = vmul.f32 %v1535, 2.0
        %v1636 = vmul.f32 %v1536, 2.0
        %v1637 = vmul.f32 %v1537, 2.0
        %v1638 = vmul.f32 %v1538, 2.0
        %v1639 = vmul.f32 %v1539, 2.0
        %v1640 = vld [vmem:[%s8] sm:$0x7]
        %v1641 = vpack.c.bf16 %v1635, %v1635
        %v1642 = vpack.c.bf16 %v1636, %v1636
        %v1643 = vpack.c.bf16 %v1637, %v1637
        %v1644 = vpack.c.bf16 %v1638, %v1638
        %v1645 = vpack.c.bf16 %v1639, %v1639
        %v1646 = vld [vmem:[%s13] sm:$0x3f]
        %1648 = vset.pattern.permute.xlu0 0
        %1649 = vperm.xlu0 %1648, %v1646
        %v1650 = vpop.permute.xlu0 %1649
        %v1653 = vsel %vm563, %v1640, 0
        %v1656 = vsel %vm567, %v1641, 0
        %v1659 = vsel %vm567, %v1642, 0
        %v1662 = vsel %vm567, %v1643, 0
        %v1665 = vsel %vm567, %v1644, 0
        %v1668 = vsel %vm567, %v1645, 0
        %1670 = vmatpush.bf16.msra.mxu0 0
        %1671 = vmatpush.bf16.msra.mxu0 0
        %1672 = vmatpush.bf16.msra.mxu0 0
        %1673 = vmatpush.bf16.msra.mxu0 0
        %1674 = vmatpush.bf16.msra.mxu0 0
        %1675 = vmatpush.bf16.msra.mxu0 0
        %1676 = vmatpush.bf16.msra.mxu0 0
        %1677 = vmatpush.bf16.msra.mxu0 %v1656
        %1678 = vmatmul.bf16.gmra.mxu0 %v1653
        %v1679 = vpop.f32.mrf.mxu0
        %v1680 = vadd.f32 %v1650, %v1679
        %v1681 = vpop.f32.mrf.mxu0
        %1682 = vdwg.mxu0
        %1683 = vmatpush.bf16.msra.mxu0 0
        %1684 = vmatpush.bf16.msra.mxu0 0
        %1685 = vmatpush.bf16.msra.mxu0 0
        %1686 = vmatpush.bf16.msra.mxu0 0
        %1687 = vmatpush.bf16.msra.mxu0 0
        %1688 = vmatpush.bf16.msra.mxu0 0
        %1689 = vmatpush.bf16.msra.mxu0 0
        %1690 = vmatpush.bf16.msra.mxu0 %v1659
        %1691 = vmatmul.bf16.gmra.mxu0 %v1653
        %v1692 = vpop.f32.mrf.mxu0
        %v1693 = vadd.f32 %v1650, %v1692
        %v1694 = vpop.f32.mrf.mxu0
        %1695 = vdwg.mxu0
        %1696 = vmatpush.bf16.msra.mxu0 0
        %1697 = vmatpush.bf16.msra.mxu0 0
        %1698 = vmatpush.bf16.msra.mxu0 0
        %1699 = vmatpush.bf16.msra.mxu0 0
        %1700 = vmatpush.bf16.msra.mxu0 0
        %1701 = vmatpush.bf16.msra.mxu0 0
        %1702 = vmatpush.bf16.msra.mxu0 0
        %1703 = vmatpush.bf16.msra.mxu0 %v1662
        %1704 = vmatmul.bf16.gmra.mxu0 %v1653
        %v1705 = vpop.f32.mrf.mxu0
        %v1706 = vadd.f32 %v1650, %v1705
        %v1707 = vpop.f32.mrf.mxu0
        %1708 = vdwg.mxu0
        %1709 = vmatpush.bf16.msra.mxu0 0
        %1710 = vmatpush.bf16.msra.mxu0 0
        %1711 = vmatpush.bf16.msra.mxu0 0
        %1712 = vmatpush.bf16.msra.mxu0 0
        %1713 = vmatpush.bf16.msra.mxu0 0
        %1714 = vmatpush.bf16.msra.mxu0 0
        %1715 = vmatpush.bf16.msra.mxu0 0
        %1716 = vmatpush.bf16.msra.mxu0 %v1665
        %1717 = vmatmul.bf16.gmra.mxu0 %v1653
        %v1718 = vpop.f32.mrf.mxu0
        %v1719 = vadd.f32 %v1650, %v1718
        %v1720 = vpop.f32.mrf.mxu0
        %1721 = vdwg.mxu0
        %1722 = vmatpush.bf16.msra.mxu0 0
        %1723 = vmatpush.bf16.msra.mxu0 0
        %1724 = vmatpush.bf16.msra.mxu0 0
        %1725 = vmatpush.bf16.msra.mxu0 0
        %1726 = vmatpush.bf16.msra.mxu0 0
        %1727 = vmatpush.bf16.msra.mxu0 0
        %1728 = vmatpush.bf16.msra.mxu0 0
        %1729 = vmatpush.bf16.msra.mxu0 %v1668
        %1730 = vmatmul.bf16.gmra.mxu0 %v1653
        %v1731 = vpop.f32.mrf.mxu0
        %v1732 = vadd.f32 %v1650, %v1731
        %v1733 = vpop.f32.mrf.mxu0
        %1734 = vdwg.mxu0
        %v1735 = vmax.f32 %v1680, 0.0
        %v1736 = vmax.f32 %v1693, 0.0
        %v1737 = vmax.f32 %v1706, 0.0
        %v1738 = vmax.f32 %v1719, 0.0
        %v1739 = vmax.f32 %v1732, 0.0
        %v1740 = vadd.f32 %v1735, %v1635
        %v1741 = vadd.f32 %v1736, %v1636
        %v1742 = vadd.f32 %v1737, %v1637
        %v1743 = vadd.f32 %v1738, %v1638
        %v1744 = vadd.f32 %v1739, %v1639
        %v1745 = vpack.c.bf16 %v1740, %v1740
        %v1746 = vpack.c.bf16 %v1741, %v1741
        %v1747 = vpack.c.bf16 %v1742, %v1742
        %v1748 = vpack.c.bf16 %v1743, %v1743
        %v1749 = vpack.c.bf16 %v1744, %v1744
        %v1751 = vsel %vm567, %v1745, 0
        %v1754 = vsel %vm567, %v1746, 0
        %v1757 = vsel %vm567, %v1747, 0
        %v1760 = vsel %vm567, %v1748, 0
        %v1763 = vsel %vm567, %v1749, 0
        %1765 = vmatpush.bf16.msra.mxu0 0
        %1766 = vmatpush.bf16.msra.mxu0 0
        %1767 = vmatpush.bf16.msra.mxu0 0
        %1768 = vmatpush.bf16.msra.mxu0 0
        %1769 = vmatpush.bf16.msra.mxu0 0
        %1770 = vmatpush.bf16.msra.mxu0 0
        %1771 = vmatpush.bf16.msra.mxu0 0
        %1772 = vmatpush.bf16.msra.mxu0 %v1751
        %1773 = vmatmul.bf16.gmra.mxu0 %v1653
        %v1774 = vpop.f32.mrf.mxu0
        %v1775 = vadd.f32 %v1650, %v1774
        %v1776 = vpop.f32.mrf.mxu0
        %1777 = vdwg.mxu0
        %1778 = vmatpush.bf16.msra.mxu0 0
        %1779 = vmatpush.bf16.msra.mxu0 0
        %1780 = vmatpush.bf16.msra.mxu0 0
        %1781 = vmatpush.bf16.msra.mxu0 0
        %1782 = vmatpush.bf16.msra.mxu0 0
        %1783 = vmatpush.bf16.msra.mxu0 0
        %1784 = vmatpush.bf16.msra.mxu0 0
        %1785 = vmatpush.bf16.msra.mxu0 %v1754
        %1786 = vmatmul.bf16.gmra.mxu0 %v1653
        %v1787 = vpop.f32.mrf.mxu0
        %v1788 = vadd.f32 %v1650, %v1787
        %v1789 = vpop.f32.mrf.mxu0
        %1790 = vdwg.mxu0
        %1791 = vmatpush.bf16.msra.mxu0 0
        %1792 = vmatpush.bf16.msra.mxu0 0
        %1793 = vmatpush.bf16.msra.mxu0 0
        %1794 = vmatpush.bf16.msra.mxu0 0
        %1795 = vmatpush.bf16.msra.mxu0 0
        %1796 = vmatpush.bf16.msra.mxu0 0
        %1797 = vmatpush.bf16.msra.mxu0 0
        %1798 = vmatpush.bf16.msra.mxu0 %v1757
        %1799 = vmatmul.bf16.gmra.mxu0 %v1653
        %v1800 = vpop.f32.mrf.mxu0
        %v1801 = vadd.f32 %v1650, %v1800
        %v1802 = vpop.f32.mrf.mxu0
        %1803 = vdwg.mxu0
        %1804 = vmatpush.bf16.msra.mxu0 0
        %1805 = vmatpush.bf16.msra.mxu0 0
        %1806 = vmatpush.bf16.msra.mxu0 0
        %1807 = vmatpush.bf16.msra.mxu0 0
        %1808 = vmatpush.bf16.msra.mxu0 0
        %1809 = vmatpush.bf16.msra.mxu0 0
        %1810 = vmatpush.bf16.msra.mxu0 0
        %1811 = vmatpush.bf16.msra.mxu0 %v1760
        %1812 = vmatmul.bf16.gmra.mxu0 %v1653
        %v1813 = vpop.f32.mrf.mxu0
        %v1814 = vadd.f32 %v1650, %v1813
        %v1815 = vpop.f32.mrf.mxu0
        %1816 = vdwg.mxu0
        %1817 = vmatpush.bf16.msra.mxu0 0
        %1818 = vmatpush.bf16.msra.mxu0 0
        %1819 = vmatpush.bf16.msra.mxu0 0
        %1820 = vmatpush.bf16.msra.mxu0 0
        %1821 = vmatpush.bf16.msra.mxu0 0
        %1822 = vmatpush.bf16.msra.mxu0 0
        %1823 = vmatpush.bf16.msra.mxu0 0
        %1824 = vmatpush.bf16.msra.mxu0 %v1763
        %1825 = vmatmul.bf16.gmra.mxu0 %v1653
        %v1826 = vpop.f32.mrf.mxu0
        %v1827 = vadd.f32 %v1650, %v1826
        %v1828 = vpop.f32.mrf.mxu0
        %1829 = vdwg.mxu0
        %v1830 = vmax.f32 %v1775, 0.0
        %v1831 = vmax.f32 %v1788, 0.0
        %v1832 = vmax.f32 %v1801, 0.0
        %v1833 = vmax.f32 %v1814, 0.0
        %v1834 = vmax.f32 %v1827, 0.0
        %v1835 = vadd.f32 %v1830, %v1635
        %v1836 = vadd.f32 %v1831, %v1636
        %v1837 = vadd.f32 %v1832, %v1637
        %v1838 = vadd.f32 %v1833, %v1638
        %v1839 = vadd.f32 %v1834, %v1639
        %v1840 = vpack.c.bf16 %v1835, %v1835
        %v1841 = vpack.c.bf16 %v1836, %v1836
        %v1842 = vpack.c.bf16 %v1837, %v1837
        %v1843 = vpack.c.bf16 %v1838, %v1838
        %v1844 = vpack.c.bf16 %v1839, %v1839
        %v1846 = vsel %vm567, %v1840, 0
        %v1849 = vsel %vm567, %v1841, 0
        %v1852 = vsel %vm567, %v1842, 0
        %v1855 = vsel %vm567, %v1843, 0
        %v1858 = vsel %vm567, %v1844, 0
        %1860 = vmatpush.bf16.msra.mxu0 0
        %1861 = vmatpush.bf16.msra.mxu0 0
        %1862 = vmatpush.bf16.msra.mxu0 0
        %1863 = vmatpush.bf16.msra.mxu0 0
        %1864 = vmatpush.bf16.msra.mxu0 0
        %1865 = vmatpush.bf16.msra.mxu0 0
        %1866 = vmatpush.bf16.msra.mxu0 0
        %1867 = vmatpush.bf16.msra.mxu0 %v1846
        %1868 = vmatmul.bf16.gmra.mxu0 %v1653
        %v1869 = vpop.f32.mrf.mxu0
        %v1870 = vadd.f32 %v1650, %v1869
        %v1871 = vpop.f32.mrf.mxu0
        %1872 = vdwg.mxu0
        %1873 = vmatpush.bf16.msra.mxu0 0
        %1874 = vmatpush.bf16.msra.mxu0 0
        %1875 = vmatpush.bf16.msra.mxu0 0
        %1876 = vmatpush.bf16.msra.mxu0 0
        %1877 = vmatpush.bf16.msra.mxu0 0
        %1878 = vmatpush.bf16.msra.mxu0 0
        %1879 = vmatpush.bf16.msra.mxu0 0
        %1880 = vmatpush.bf16.msra.mxu0 %v1849
        %1881 = vmatmul.bf16.gmra.mxu0 %v1653
        %v1882 = vpop.f32.mrf.mxu0
        %v1883 = vadd.f32 %v1650, %v1882
        %v1884 = vpop.f32.mrf.mxu0
        %1885 = vdwg.mxu0
        %1886 = vmatpush.bf16.msra.mxu0 0
        %1887 = vmatpush.bf16.msra.mxu0 0
        %1888 = vmatpush.bf16.msra.mxu0 0
        %1889 = vmatpush.bf16.msra.mxu0 0
        %1890 = vmatpush.bf16.msra.mxu0 0
        %1891 = vmatpush.bf16.msra.mxu0 0
        %1892 = vmatpush.bf16.msra.mxu0 0
        %1893 = vmatpush.bf16.msra.mxu0 %v1852
        %1894 = vmatmul.bf16.gmra.mxu0 %v1653
        %v1895 = vpop.f32.mrf.mxu0
        %v1896 = vadd.f32 %v1650, %v1895
        %v1897 = vpop.f32.mrf.mxu0
        %1898 = vdwg.mxu0
        %1899 = vmatpush.bf16.msra.mxu0 0
        %1900 = vmatpush.bf16.msra.mxu0 0
        %1901 = vmatpush.bf16.msra.mxu0 0
        %1902 = vmatpush.bf16.msra.mxu0 0
        %1903 = vmatpush.bf16.msra.mxu0 0
        %1904 = vmatpush.bf16.msra.mxu0 0
        %1905 = vmatpush.bf16.msra.mxu0 0
        %1906 = vmatpush.bf16.msra.mxu0 %v1855
        %1907 = vmatmul.bf16.gmra.mxu0 %v1653
        %v1908 = vpop.f32.mrf.mxu0
        %v1909 = vadd.f32 %v1650, %v1908
        %v1910 = vpop.f32.mrf.mxu0
        %1911 = vdwg.mxu0
        %1912 = vmatpush.bf16.msra.mxu0 0
        %1913 = vmatpush.bf16.msra.mxu0 0
        %1914 = vmatpush.bf16.msra.mxu0 0
        %1915 = vmatpush.bf16.msra.mxu0 0
        %1916 = vmatpush.bf16.msra.mxu0 0
        %1917 = vmatpush.bf16.msra.mxu0 0
        %1918 = vmatpush.bf16.msra.mxu0 0
        %1919 = vmatpush.bf16.msra.mxu0 %v1858
        %1920 = vmatmul.bf16.gmra.mxu0 %v1653
        %v1921 = vpop.f32.mrf.mxu0
        %v1922 = vadd.f32 %v1650, %v1921
        %v1923 = vpop.f32.mrf.mxu0
        %1924 = vdwg.mxu0
        %v1925 = vmax.f32 %v1870, 0.0
        %v1926 = vmax.f32 %v1883, 0.0
        %v1927 = vmax.f32 %v1896, 0.0
        %v1928 = vmax.f32 %v1909, 0.0
        %v1929 = vmax.f32 %v1922, 0.0
        %v1930 = vadd.f32 %v1925, %v1580
        %v1931 = vadd.f32 %v1926, %v1593
        %v1932 = vadd.f32 %v1927, %v1606
        %v1933 = vadd.f32 %v1928, %v1619
        %v1934 = vadd.f32 %v1929, %v1632
        %v1935 = vpack.c.bf16 %v1931, %v1930
        %v1936 = vpack.c.bf16 %v1933, %v1932
        %v1937 = vpack.c.bf16 %v1934, %v1934
        %1938 = vst [vmem:[%s542] sm:$0x77] %v1935
        %1939 = vst [vmem:[%s542 + $0x8] sm:$0x77] %v1936
        %1940 = vst [vmem:[%s542 + $0x10] sm:$0x7] %v1937
        %s1941 = smul.u32 5, %s31
        %p1942 = scmp.lt.s32.totalorder %s30, 1
        %s1943 = scalar_select %p1942, %s30, 1
        %p1944 = scmp.lt.s32.totalorder %s1941, 9
        %s1945 = scalar_select %p1944, %s1941, 9
        %s1946 = smul.addr %s1943, 10
        %s1947 = sadd.s32 %s1945, %s1946
        %s1948 = smul.addr %s1947, 4
        %s1949 = scalar_lea.vmem %s14, %s1948
        // Predicated region
        $region81: #{upconv_concat_rrblock.1} parent=75 // pred_check
          %p1950 = pneg %p364
        $region82: #{upconv_concat_rrblock.1} parent=75 // pred_check_branch
          %1952 = sbr.rel (%p1950) target = $region84
        $region83: #{upconv_concat_rrblock.1} parent=75 // pred_region
          %s1953 = smul.u32 5, %s31
        $region84: #{upconv_concat_rrblock.1} parent=75 // pred_fallthru
          _
      $region76: #{upconv_concat_rrblock.1} parent=5 // pred_fallthru
        _
      %p1954 = scmp.le.s32.totalorder 2, %s21
      // Predicated region
      $region85: #{upconv_concat_rrblock.1} parent=5 // pred_check
        %p1955 = pneg %p1954
      $region86: #{upconv_concat_rrblock.1} parent=5 // pred_check_branch
        %1957 = sbr.rel (%p1955) target = $region88
      $region87: #{upconv_concat_rrblock.1} parent=5 // pred_region
        %s1958 = ssub.s32 %s21, 2
        // Predicated region
        $region89: #{upconv_concat_rrblock.1} parent=87 // pred_check
          %p1959 = pneg %p370
        $region90: #{upconv_concat_rrblock.1} parent=87 // pred_check_branch
          %1961 = sbr.rel (%p1959) target = $region92
        $region91: #{upconv_concat_rrblock.1} parent=87 // pred_region
          %s1962 = smul.u32 5, %s33
          %p1963 = scmp.lt.s32.totalorder %s32, 1
          %s1964 = scalar_select %p1963, %s32, 1
          %p1965 = scmp.lt.s32.totalorder %s1962, 9
          %s1966 = scalar_select %p1965, %s1962, 9
          %s1967 = smul.addr %s1964, 10
          %s1968 = sadd.s32 %s1966, %s1967
          %s1969 = smul.addr %s1968, 4
          %s1970 = scalar_lea.vmem %s14, %s1969
        $region92: #{upconv_concat_rrblock.1} parent=87 // pred_fallthru
          _
      $region88: #{upconv_concat_rrblock.1} parent=5 // pred_fallthru
        _
    $region6: #{upconv_concat_rrblock.1} parent=1 // loop_footer
      %s25 = sadd.s32 1, %s21
    $region7: #{upconv_concat_rrblock.1} parent=1 // loop_footer_branch
      %20 = sbr.rel target = $region3
    $region8: #{upconv_concat_rrblock.1} parent=1 // loop_exit
      _
    %1971 = vsyncpa [#allocation3], 1
    %s1972 = scalar_lea.sflag [#allocation3], 1
    %1973 = vsyncpa %s1972, 1

</llo_original>
